<compile_context>
chip_gen: v7x
topology: tpu7x:2x2x1
jax: 0.10.0
libtpu: 0.0.40
codegen_flags: <defaults>
</compile_context>

<pallas_src>
import jax
import jax.numpy as jnp
from jax.experimental import pallas as pl
from jax.experimental.pallas import tpu as pltpu

CONTEXT_SIZE = 8     # stand-in for CONSTANTS.context_size
EMBED_DIM = 100      # fixed by the module (nn.Embedding(vocab_size, 100))
VOCAB_SIZE = 32
BATCH = 2


def _round_up(x, m):
    return (x + m - 1) // m * m


def fflm_kernel(ids_ref, embed_ref, w_ref, bias_ref, out_ref, x_ref):
    """ids_ref: SMEM (B_pad, C) int32 (scalar prefetch)
       embed_ref: VMEM (V_rows, E_pad) f32
       w_ref: VMEM (C*E_pad, TILE_V) bf16
       bias_ref: VMEM (1, TILE_V) f32
       out_ref: VMEM (B_pad, TILE_V) f32
       x_ref: VMEM scratch (B_pad, C*E_pad) f32 (flattened activations)."""
    b_pad, c_ctx = ids_ref.shape
    e_pad = embed_ref.shape[1]

    # Embedding gather: dynamic row reads indexed from SMEM.  No one-hot
    # matmul, so cost is O(B*C*E) copies and the MXU is left for the linear.
    for b in range(b_pad):                 # static -> fully unrolled (64 tiny copies)
        for c in range(c_ctx):
            idx = ids_ref[b, c]
            x_ref[pl.ds(b, 1), pl.ds(c * e_pad, e_pad)] = embed_ref[pl.ds(idx, 1), :]

    # Single lane-dense MXU contraction over the whole flattened hidden dim
    # (K = C*E_pad = 1024).  Activations are cast to the weight dtype right at
    # the matmul; bias add + ReLU stay in f32 on the VPU.
    acc = jnp.dot(x_ref[...].astype(w_ref.dtype), w_ref[...],
                  preferred_element_type=jnp.float32)
    out_ref[...] = jnp.maximum(acc + bias_ref[...], 0.0)


def fflm_forward(ids, embed_table, weight, bias, *, param_dtype=jnp.bfloat16):
    """ids: (B, C) int; embed_table: (V, E) f32; weight: (V, C*E) f32 (nn.Linear);
       bias: (V,) f32.  Returns (B, V) f32."""
    V, E = embed_table.shape
    B, C = ids.shape
    assert weight.shape == (V, C * E) and bias.shape == (V,)

    B_pad = _round_up(B, 8)                     # sublane-align batch
    E_pad = _round_up(E, 128)                   # lane-align embedding dim
    V_rows = _round_up(V, 8)                    # sublane-align embedding rows
    V_pad = _round_up(V, 128)                   # lane-align output vocab
    TILE_V = min(V_pad, 2048)                   # fits v7x 64 MiB VMEM w/ 2x buffering
    V_pad = _round_up(V_pad, TILE_V)
    nv = V_pad // TILE_V
    K = C * E_pad

    # ids: clamp (PyTorch would raise on OOB; clamping prevents OOB VMEM reads),
    # pad batch rows, and keep in int32 for SMEM scalar prefetch.
    ids_p = jnp.clip(ids.astype(jnp.int32), 0, V - 1)
    ids_p = jnp.pad(ids_p, ((0, B_pad - B), (0, 0)))

    # Embedding table: zero-pad to (V_rows, E_pad), kept f32 (dynamic row reads).
    embed_p = jnp.zeros((V_rows, E_pad), jnp.float32).at[:V, :E].set(
        embed_table.astype(jnp.float32))

    # Linear weight: (V, C*E) -> (C, E, V) -> zero-pad -> (C*E_pad, V_pad), bf16.
    # Zero padding in E lines up with the zero-padded activation lanes.
    w_r = weight.astype(jnp.float32).reshape(V, C, E).transpose(1, 2, 0)   # (C, E, V)
    w_p = jnp.zeros((C, E_pad, V_pad), jnp.float32).at[:, :E, :V].set(w_r)
    w_p = w_p.reshape(K, V_pad).astype(param_dtype)

    bias_p = jnp.zeros((1, V_pad), jnp.float32).at[0, :V].set(bias.astype(jnp.float32))

    itemsize = jnp.dtype(param_dtype).itemsize
    out_pad = pl.pallas_call(
        fflm_kernel,
        out_shape=jax.ShapeDtypeStruct((B_pad, V_pad), jnp.float32),
        grid_spec=pltpu.PrefetchScalarGridSpec(
            num_scalar_prefetch=1,                     # ids -> SMEM
            grid=(nv,),                                # tiles over output vocab
            in_specs=[
                pl.BlockSpec((V_rows, E_pad), lambda j, ids: (0, 0)),   # embed (whole)
                pl.BlockSpec((K, TILE_V), lambda j, ids: (0, j)),       # weight tile
                pl.BlockSpec((1, TILE_V), lambda j, ids: (0, j)),       # bias tile
            ],
            out_specs=pl.BlockSpec((B_pad, TILE_V), lambda j, ids: (0, j)),
            scratch_shapes=[pltpu.VMEM((B_pad, K), jnp.float32)],
        ),
        compiler_params=pltpu.CompilerParams(
            dimension_semantics=("parallel",),         # v7x: both TCs split V tiles
        ),
        cost_estimate=pl.CostEstimate(
            flops=2 * B_pad * K * V_pad,
            transcendentals=0,
            bytes_accessed=(K * V_pad * itemsize            # weight
                            + V_rows * E_pad * 4            # embedding table
                            + B_pad * V_pad * 4             # output
                            + V_pad * 4 + B_pad * C * 4),   # bias + ids
        ),
        # TODO(synk): for realistic vocab sizes raise vmem_limit_bytes and/or
        # shrink TILE_V so 2x double-buffered weight tiles fit v7x's 64 MiB VMEM.
    )(ids_p, embed_p, w_p, bias_p)

    return out_pad[:B, :V]


def fflm_reference(ids, embed_table, weight, bias, *, param_dtype=jnp.bfloat16):
    """Pure-JAX reference mirroring the PyTorch forward, using the same
    bf16-rounded matmul operands the kernel feeds the MXU."""
    B, C = ids.shape
    x = jnp.take(embed_table, ids, axis=0).reshape(B, C * EMBED_DIM)
    x_q = x.astype(param_dtype).astype(jnp.float32)
    w_q = weight.astype(param_dtype).astype(jnp.float32)
    out = jnp.dot(x_q, w_q.T, precision=jax.lax.Precision.HIGHEST) + bias
    return jnp.maximum(out, 0.0)


if __name__ == "__main__":
    key = jax.random.PRNGKey(0)
    k_ids, k_emb, k_w, k_b = jax.random.split(key, 4)

    ids = jax.random.randint(k_ids, (BATCH, CONTEXT_SIZE), 0, VOCAB_SIZE,
                             dtype=jnp.int32)
    # Deterministic init mimicking PyTorch defaults:
    #   nn.Embedding: N(0,1); nn.Linear: U(-1/sqrt(in), 1/sqrt(in))
    embed_table = jax.random.normal(k_emb, (VOCAB_SIZE, EMBED_DIM), jnp.float32)
    bound = 1.0 / jnp.sqrt(float(CONTEXT_SIZE * EMBED_DIM))
    weight = jax.random.uniform(k_w, (VOCAB_SIZE, CONTEXT_SIZE * EMBED_DIM),
                                jnp.float32, -bound, bound)
    bias = jax.random.uniform(k_b, (VOCAB_SIZE,), jnp.float32, -bound, bound)

    out = jax.block_until_ready(fflm_forward(ids, embed_table, weight, bias))
    ref = fflm_reference(ids, embed_table, weight, bias)

    assert out.shape == (BATCH, VOCAB_SIZE)
    assert jnp.allclose(out, ref, atol=2e-3, rtol=2e-3), (
        f"mismatch vs reference, max abs err = {jnp.max(jnp.abs(out - ref))}")

    print("KERNEL_OK")
</pallas_src>

<mosaic_0001>
module attributes {stable_mosaic.version = 11 : i64} {
  func.func @fflm_kernel(%arg0: i32, %arg1: memref<8x8xi32, #tpu.memory_space<smem>>, %arg2: memref<32x128xf32, #tpu.memory_space<vmem>>, %arg3: memref<1024x128xbf16, #tpu.memory_space<vmem>>, %arg4: memref<1x128xf32, #tpu.memory_space<vmem>>, %arg5: memref<8x128xf32, #tpu.memory_space<vmem>>, %arg6: memref<8x1024xf32, #tpu.memory_space<vmem>>) attributes {dimension_semantics = [#tpu.dimension_semantics<parallel>], iteration_bounds = array<i64: 1>, scalar_prefetch = 1 : i64, scratch_operands = 1 : i64, tpu.core_type = #tpu.core_type<tc>, window_params = [{pipeline_mode = #tpu.pipeline_mode<synchronous>, transform_indices = @transform_0, window_bounds = array<i64: 32, 128>}, {transform_indices = @transform_1, window_bounds = array<i64: 1024, 128>}, {transform_indices = @transform_2, window_bounds = array<i64: 1, 128>}, {transform_indices = @transform_3, window_bounds = array<i64: 8, 128>}]} {
    %c0 = arith.constant 0 : index
    %c0_0 = arith.constant 0 : index
    %0 = memref.load %arg1[%c0, %c0_0] : memref<8x8xi32, #tpu.memory_space<smem>>
    %1 = arith.index_cast %0 : i32 to index
    %c0_1 = arith.constant 0 : index
    %2 = vector.load %arg2[%1, %c0_1] : memref<32x128xf32, #tpu.memory_space<vmem>>, vector<1x128xf32>
    %c0_2 = arith.constant 0 : index
    %c0_3 = arith.constant 0 : index
    %3 = vector.load %arg6[%c0_2, %c0_3] : memref<8x1024xf32, #tpu.memory_space<vmem>>, vector<1x128xf32>
    tpu.vector_store %arg6[%c0_2, %c0_3], %2 {strides = array<i32>} : memref<8x1024xf32, #tpu.memory_space<vmem>>, vector<1x128xf32>,
    %c0_4 = arith.constant 0 : index
    %c1 = arith.constant 1 : index
    %4 = memref.load %arg1[%c0_4, %c1] : memref<8x8xi32, #tpu.memory_space<smem>>
    %5 = arith.index_cast %4 : i32 to index
    %c0_5 = arith.constant 0 : index
    %6 = vector.load %arg2[%5, %c0_5] : memref<32x128xf32, #tpu.memory_space<vmem>>, vector<1x128xf32>
    %c0_6 = arith.constant 0 : index
    %c128 = arith.constant 128 : index
    %7 = vector.load %arg6[%c0_6, %c128] : memref<8x1024xf32, #tpu.memory_space<vmem>>, vector<1x128xf32>
    tpu.vector_store %arg6[%c0_6, %c128], %6 {strides = array<i32>} : memref<8x1024xf32, #tpu.memory_space<vmem>>, vector<1x128xf32>,
    %c0_7 = arith.constant 0 : index
    %c2 = arith.constant 2 : index
    %8 = memref.load %arg1[%c0_7, %c2] : memref<8x8xi32, #tpu.memory_space<smem>>
    %9 = arith.index_cast %8 : i32 to index
    %c0_8 = arith.constant 0 : index
    %10 = vector.load %arg2[%9, %c0_8] : memref<32x128xf32, #tpu.memory_space<vmem>>, vector<1x128xf32>
    %c0_9 = arith.constant 0 : index
    %c256 = arith.constant 256 : index
    %11 = vector.load %arg6[%c0_9, %c256] : memref<8x1024xf32, #tpu.memory_space<vmem>>, vector<1x128xf32>
    tpu.vector_store %arg6[%c0_9, %c256], %10 {strides = array<i32>} : memref<8x1024xf32, #tpu.memory_space<vmem>>, vector<1x128xf32>,
    %c0_10 = arith.constant 0 : index
    %c3 = arith.constant 3 : index
    %12 = memref.load %arg1[%c0_10, %c3] : memref<8x8xi32, #tpu.memory_space<smem>>
    %13 = arith.index_cast %12 : i32 to index
    %c0_11 = arith.constant 0 : index
    %14 = vector.load %arg2[%13, %c0_11] : memref<32x128xf32, #tpu.memory_space<vmem>>, vector<1x128xf32>
    %c0_12 = arith.constant 0 : index
    %c384 = arith.constant 384 : index
    %15 = vector.load %arg6[%c0_12, %c384] : memref<8x1024xf32, #tpu.memory_space<vmem>>, vector<1x128xf32>
    tpu.vector_store %arg6[%c0_12, %c384], %14 {strides = array<i32>} : memref<8x1024xf32, #tpu.memory_space<vmem>>, vector<1x128xf32>,
    %c0_13 = arith.constant 0 : index
    %c4 = arith.constant 4 : index
    %16 = memref.load %arg1[%c0_13, %c4] : memref<8x8xi32, #tpu.memory_space<smem>>
    %17 = arith.index_cast %16 : i32 to index
    %c0_14 = arith.constant 0 : index
    %18 = vector.load %arg2[%17, %c0_14] : memref<32x128xf32, #tpu.memory_space<vmem>>, vector<1x128xf32>
    %c0_15 = arith.constant 0 : index
    %c512 = arith.constant 512 : index
    %19 = vector.load %arg6[%c0_15, %c512] : memref<8x1024xf32, #tpu.memory_space<vmem>>, vector<1x128xf32>
    tpu.vector_store %arg6[%c0_15, %c512], %18 {strides = array<i32>} : memref<8x1024xf32, #tpu.memory_space<vmem>>, vector<1x128xf32>,
    %c0_16 = arith.constant 0 : index
    %c5 = arith.constant 5 : index
    %20 = memref.load %arg1[%c0_16, %c5] : memref<8x8xi32, #tpu.memory_space<smem>>
    %21 = arith.index_cast %20 : i32 to index
    %c0_17 = arith.constant 0 : index
    %22 = vector.load %arg2[%21, %c0_17] : memref<32x128xf32, #tpu.memory_space<vmem>>, vector<1x128xf32>
    %c0_18 = arith.constant 0 : index
    %c640 = arith.constant 640 : index
    %23 = vector.load %arg6[%c0_18, %c640] : memref<8x1024xf32, #tpu.memory_space<vmem>>, vector<1x128xf32>
    tpu.vector_store %arg6[%c0_18, %c640], %22 {strides = array<i32>} : memref<8x1024xf32, #tpu.memory_space<vmem>>, vector<1x128xf32>,
    %c0_19 = arith.constant 0 : index
    %c6 = arith.constant 6 : index
    %24 = memref.load %arg1[%c0_19, %c6] : memref<8x8xi32, #tpu.memory_space<smem>>
    %25 = arith.index_cast %24 : i32 to index
    %c0_20 = arith.constant 0 : index
    %26 = vector.load %arg2[%25, %c0_20] : memref<32x128xf32, #tpu.memory_space<vmem>>, vector<1x128xf32>
    %c0_21 = arith.constant 0 : index
    %c768 = arith.constant 768 : index
    %27 = vector.load %arg6[%c0_21, %c768] : memref<8x1024xf32, #tpu.memory_space<vmem>>, vector<1x128xf32>
    tpu.vector_store %arg6[%c0_21, %c768], %26 {strides = array<i32>} : memref<8x1024xf32, #tpu.memory_space<vmem>>, vector<1x128xf32>,
    %c0_22 = arith.constant 0 : index
    %c7 = arith.constant 7 : index
    %28 = memref.load %arg1[%c0_22, %c7] : memref<8x8xi32, #tpu.memory_space<smem>>
    %29 = arith.index_cast %28 : i32 to index
    %c0_23 = arith.constant 0 : index
    %30 = vector.load %arg2[%29, %c0_23] : memref<32x128xf32, #tpu.memory_space<vmem>>, vector<1x128xf32>
    %c0_24 = arith.constant 0 : index
    %c896 = arith.constant 896 : index
    %31 = vector.load %arg6[%c0_24, %c896] : memref<8x1024xf32, #tpu.memory_space<vmem>>, vector<1x128xf32>
    tpu.vector_store %arg6[%c0_24, %c896], %30 {strides = array<i32>} : memref<8x1024xf32, #tpu.memory_space<vmem>>, vector<1x128xf32>,
    %c1_25 = arith.constant 1 : index
    %c0_26 = arith.constant 0 : index
    %32 = memref.load %arg1[%c1_25, %c0_26] : memref<8x8xi32, #tpu.memory_space<smem>>
    %33 = arith.index_cast %32 : i32 to index
    %c0_27 = arith.constant 0 : index
    %34 = vector.load %arg2[%33, %c0_27] : memref<32x128xf32, #tpu.memory_space<vmem>>, vector<1x128xf32>
    %c1_28 = arith.constant 1 : index
    %c0_29 = arith.constant 0 : index
    %35 = vector.load %arg6[%c1_28, %c0_29] : memref<8x1024xf32, #tpu.memory_space<vmem>>, vector<1x128xf32>
    tpu.vector_store %arg6[%c1_28, %c0_29], %34 {strides = array<i32>} : memref<8x1024xf32, #tpu.memory_space<vmem>>, vector<1x128xf32>,
    %c1_30 = arith.constant 1 : index
    %c1_31 = arith.constant 1 : index
    %36 = memref.load %arg1[%c1_30, %c1_31] : memref<8x8xi32, #tpu.memory_space<smem>>
    %37 = arith.index_cast %36 : i32 to index
    %c0_32 = arith.constant 0 : index
    %38 = vector.load %arg2[%37, %c0_32] : memref<32x128xf32, #tpu.memory_space<vmem>>, vector<1x128xf32>
    %c1_33 = arith.constant 1 : index
    %c128_34 = arith.constant 128 : index
    %39 = vector.load %arg6[%c1_33, %c128_34] : memref<8x1024xf32, #tpu.memory_space<vmem>>, vector<1x128xf32>
    tpu.vector_store %arg6[%c1_33, %c128_34], %38 {strides = array<i32>} : memref<8x1024xf32, #tpu.memory_space<vmem>>, vector<1x128xf32>,
    %c1_35 = arith.constant 1 : index
    %c2_36 = arith.constant 2 : index
    %40 = memref.load %arg1[%c1_35, %c2_36] : memref<8x8xi32, #tpu.memory_space<smem>>
    %41 = arith.index_cast %40 : i32 to index
    %c0_37 = arith.constant 0 : index
    %42 = vector.load %arg2[%41, %c0_37] : memref<32x128xf32, #tpu.memory_space<vmem>>, vector<1x128xf32>
    %c1_38 = arith.constant 1 : index
    %c256_39 = arith.constant 256 : index
    %43 = vector.load %arg6[%c1_38, %c256_39] : memref<8x1024xf32, #tpu.memory_space<vmem>>, vector<1x128xf32>
    tpu.vector_store %arg6[%c1_38, %c256_39], %42 {strides = array<i32>} : memref<8x1024xf32, #tpu.memory_space<vmem>>, vector<1x128xf32>,
    %c1_40 = arith.constant 1 : index
    %c3_41 = arith.constant 3 : index
    %44 = memref.load %arg1[%c1_40, %c3_41] : memref<8x8xi32, #tpu.memory_space<smem>>
    %45 = arith.index_cast %44 : i32 to index
    %c0_42 = arith.constant 0 : index
    %46 = vector.load %arg2[%45, %c0_42] : memref<32x128xf32, #tpu.memory_space<vmem>>, vector<1x128xf32>
    %c1_43 = arith.constant 1 : index
    %c384_44 = arith.constant 384 : index
    %47 = vector.load %arg6[%c1_43, %c384_44] : memref<8x1024xf32, #tpu.memory_space<vmem>>, vector<1x128xf32>
    tpu.vector_store %arg6[%c1_43, %c384_44], %46 {strides = array<i32>} : memref<8x1024xf32, #tpu.memory_space<vmem>>, vector<1x128xf32>,
    %c1_45 = arith.constant 1 : index
    %c4_46 = arith.constant 4 : index
    %48 = memref.load %arg1[%c1_45, %c4_46] : memref<8x8xi32, #tpu.memory_space<smem>>
    %49 = arith.index_cast %48 : i32 to index
    %c0_47 = arith.constant 0 : index
    %50 = vector.load %arg2[%49, %c0_47] : memref<32x128xf32, #tpu.memory_space<vmem>>, vector<1x128xf32>
    %c1_48 = arith.constant 1 : index
    %c512_49 = arith.constant 512 : index
    %51 = vector.load %arg6[%c1_48, %c512_49] : memref<8x1024xf32, #tpu.memory_space<vmem>>, vector<1x128xf32>
    tpu.vector_store %arg6[%c1_48, %c512_49], %50 {strides = array<i32>} : memref<8x1024xf32, #tpu.memory_space<vmem>>, vector<1x128xf32>,
    %c1_50 = arith.constant 1 : index
    %c5_51 = arith.constant 5 : index
    %52 = memref.load %arg1[%c1_50, %c5_51] : memref<8x8xi32, #tpu.memory_space<smem>>
    %53 = arith.index_cast %52 : i32 to index
    %c0_52 = arith.constant 0 : index
    %54 = vector.load %arg2[%53, %c0_52] : memref<32x128xf32, #tpu.memory_space<vmem>>, vector<1x128xf32>
    %c1_53 = arith.constant 1 : index
    %c640_54 = arith.constant 640 : index
    %55 = vector.load %arg6[%c1_53, %c640_54] : memref<8x1024xf32, #tpu.memory_space<vmem>>, vector<1x128xf32>
    tpu.vector_store %arg6[%c1_53, %c640_54], %54 {strides = array<i32>} : memref<8x1024xf32, #tpu.memory_space<vmem>>, vector<1x128xf32>,
    %c1_55 = arith.constant 1 : index
    %c6_56 = arith.constant 6 : index
    %56 = memref.load %arg1[%c1_55, %c6_56] : memref<8x8xi32, #tpu.memory_space<smem>>
    %57 = arith.index_cast %56 : i32 to index
    %c0_57 = arith.constant 0 : index
    %58 = vector.load %arg2[%57, %c0_57] : memref<32x128xf32, #tpu.memory_space<vmem>>, vector<1x128xf32>
    %c1_58 = arith.constant 1 : index
    %c768_59 = arith.constant 768 : index
    %59 = vector.load %arg6[%c1_58, %c768_59] : memref<8x1024xf32, #tpu.memory_space<vmem>>, vector<1x128xf32>
    tpu.vector_store %arg6[%c1_58, %c768_59], %58 {strides = array<i32>} : memref<8x1024xf32, #tpu.memory_space<vmem>>, vector<1x128xf32>,
    %c1_60 = arith.constant 1 : index
    %c7_61 = arith.constant 7 : index
    %60 = memref.load %arg1[%c1_60, %c7_61] : memref<8x8xi32, #tpu.memory_space<smem>>
    %61 = arith.index_cast %60 : i32 to index
    %c0_62 = arith.constant 0 : index
    %62 = vector.load %arg2[%61, %c0_62] : memref<32x128xf32, #tpu.memory_space<vmem>>, vector<1x128xf32>
    %c1_63 = arith.constant 1 : index
    %c896_64 = arith.constant 896 : index
    %63 = vector.load %arg6[%c1_63, %c896_64] : memref<8x1024xf32, #tpu.memory_space<vmem>>, vector<1x128xf32>
    tpu.vector_store %arg6[%c1_63, %c896_64], %62 {strides = array<i32>} : memref<8x1024xf32, #tpu.memory_space<vmem>>, vector<1x128xf32>,
    %c2_65 = arith.constant 2 : index
    %c0_66 = arith.constant 0 : index
    %64 = memref.load %arg1[%c2_65, %c0_66] : memref<8x8xi32, #tpu.memory_space<smem>>
    %65 = arith.index_cast %64 : i32 to index
    %c0_67 = arith.constant 0 : index
    %66 = vector.load %arg2[%65, %c0_67] : memref<32x128xf32, #tpu.memory_space<vmem>>, vector<1x128xf32>
    %c2_68 = arith.constant 2 : index
    %c0_69 = arith.constant 0 : index
    %67 = vector.load %arg6[%c2_68, %c0_69] : memref<8x1024xf32, #tpu.memory_space<vmem>>, vector<1x128xf32>
    tpu.vector_store %arg6[%c2_68, %c0_69], %66 {strides = array<i32>} : memref<8x1024xf32, #tpu.memory_space<vmem>>, vector<1x128xf32>,
    %c2_70 = arith.constant 2 : index
    %c1_71 = arith.constant 1 : index
    %68 = memref.load %arg1[%c2_70, %c1_71] : memref<8x8xi32, #tpu.memory_space<smem>>
    %69 = arith.index_cast %68 : i32 to index
    %c0_72 = arith.constant 0 : index
    %70 = vector.load %arg2[%69, %c0_72] : memref<32x128xf32, #tpu.memory_space<vmem>>, vector<1x128xf32>
    %c2_73 = arith.constant 2 : index
    %c128_74 = arith.constant 128 : index
    %71 = vector.load %arg6[%c2_73, %c128_74] : memref<8x1024xf32, #tpu.memory_space<vmem>>, vector<1x128xf32>
    tpu.vector_store %arg6[%c2_73, %c128_74], %70 {strides = array<i32>} : memref<8x1024xf32, #tpu.memory_space<vmem>>, vector<1x128xf32>,
    %c2_75 = arith.constant 2 : index
    %c2_76 = arith.constant 2 : index
    %72 = memref.load %arg1[%c2_75, %c2_76] : memref<8x8xi32, #tpu.memory_space<smem>>
    %73 = arith.index_cast %72 : i32 to index
    %c0_77 = arith.constant 0 : index
    %74 = vector.load %arg2[%73, %c0_77] : memref<32x128xf32, #tpu.memory_space<vmem>>, vector<1x128xf32>
    %c2_78 = arith.constant 2 : index
    %c256_79 = arith.constant 256 : index
    %75 = vector.load %arg6[%c2_78, %c256_79] : memref<8x1024xf32, #tpu.memory_space<vmem>>, vector<1x128xf32>
    tpu.vector_store %arg6[%c2_78, %c256_79], %74 {strides = array<i32>} : memref<8x1024xf32, #tpu.memory_space<vmem>>, vector<1x128xf32>,
    %c2_80 = arith.constant 2 : index
    %c3_81 = arith.constant 3 : index
    %76 = memref.load %arg1[%c2_80, %c3_81] : memref<8x8xi32, #tpu.memory_space<smem>>
    %77 = arith.index_cast %76 : i32 to index
    %c0_82 = arith.constant 0 : index
    %78 = vector.load %arg2[%77, %c0_82] : memref<32x128xf32, #tpu.memory_space<vmem>>, vector<1x128xf32>
    %c2_83 = arith.constant 2 : index
    %c384_84 = arith.constant 384 : index
    %79 = vector.load %arg6[%c2_83, %c384_84] : memref<8x1024xf32, #tpu.memory_space<vmem>>, vector<1x128xf32>
    tpu.vector_store %arg6[%c2_83, %c384_84], %78 {strides = array<i32>} : memref<8x1024xf32, #tpu.memory_space<vmem>>, vector<1x128xf32>,
    %c2_85 = arith.constant 2 : index
    %c4_86 = arith.constant 4 : index
    %80 = memref.load %arg1[%c2_85, %c4_86] : memref<8x8xi32, #tpu.memory_space<smem>>
    %81 = arith.index_cast %80 : i32 to index
    %c0_87 = arith.constant 0 : index
    %82 = vector.load %arg2[%81, %c0_87] : memref<32x128xf32, #tpu.memory_space<vmem>>, vector<1x128xf32>
    %c2_88 = arith.constant 2 : index
    %c512_89 = arith.constant 512 : index
    %83 = vector.load %arg6[%c2_88, %c512_89] : memref<8x1024xf32, #tpu.memory_space<vmem>>, vector<1x128xf32>
    tpu.vector_store %arg6[%c2_88, %c512_89], %82 {strides = array<i32>} : memref<8x1024xf32, #tpu.memory_space<vmem>>, vector<1x128xf32>,
    %c2_90 = arith.constant 2 : index
    %c5_91 = arith.constant 5 : index
    %84 = memref.load %arg1[%c2_90, %c5_91] : memref<8x8xi32, #tpu.memory_space<smem>>
    %85 = arith.index_cast %84 : i32 to index
    %c0_92 = arith.constant 0 : index
    %86 = vector.load %arg2[%85, %c0_92] : memref<32x128xf32, #tpu.memory_space<vmem>>, vector<1x128xf32>
    %c2_93 = arith.constant 2 : index
    %c640_94 = arith.constant 640 : index
    %87 = vector.load %arg6[%c2_93, %c640_94] : memref<8x1024xf32, #tpu.memory_space<vmem>>, vector<1x128xf32>
    tpu.vector_store %arg6[%c2_93, %c640_94], %86 {strides = array<i32>} : memref<8x1024xf32, #tpu.memory_space<vmem>>, vector<1x128xf32>,
    %c2_95 = arith.constant 2 : index
    %c6_96 = arith.constant 6 : index
    %88 = memref.load %arg1[%c2_95, %c6_96] : memref<8x8xi32, #tpu.memory_space<smem>>
    %89 = arith.index_cast %88 : i32 to index
    %c0_97 = arith.constant 0 : index
    %90 = vector.load %arg2[%89, %c0_97] : memref<32x128xf32, #tpu.memory_space<vmem>>, vector<1x128xf32>
    %c2_98 = arith.constant 2 : index
    %c768_99 = arith.constant 768 : index
    %91 = vector.load %arg6[%c2_98, %c768_99] : memref<8x1024xf32, #tpu.memory_space<vmem>>, vector<1x128xf32>
    tpu.vector_store %arg6[%c2_98, %c768_99], %90 {strides = array<i32>} : memref<8x1024xf32, #tpu.memory_space<vmem>>, vector<1x128xf32>,
    %c2_100 = arith.constant 2 : index
    %c7_101 = arith.constant 7 : index
    %92 = memref.load %arg1[%c2_100, %c7_101] : memref<8x8xi32, #tpu.memory_space<smem>>
    %93 = arith.index_cast %92 : i32 to index
    %c0_102 = arith.constant 0 : index
    %94 = vector.load %arg2[%93, %c0_102] : memref<32x128xf32, #tpu.memory_space<vmem>>, vector<1x128xf32>
    %c2_103 = arith.constant 2 : index
    %c896_104 = arith.constant 896 : index
    %95 = vector.load %arg6[%c2_103, %c896_104] : memref<8x1024xf32, #tpu.memory_space<vmem>>, vector<1x128xf32>
    tpu.vector_store %arg6[%c2_103, %c896_104], %94 {strides = array<i32>} : memref<8x1024xf32, #tpu.memory_space<vmem>>, vector<1x128xf32>,
    %c3_105 = arith.constant 3 : index
    %c0_106 = arith.constant 0 : index
    %96 = memref.load %arg1[%c3_105, %c0_106] : memref<8x8xi32, #tpu.memory_space<smem>>
    %97 = arith.index_cast %96 : i32 to index
    %c0_107 = arith.constant 0 : index
    %98 = vector.load %arg2[%97, %c0_107] : memref<32x128xf32, #tpu.memory_space<vmem>>, vector<1x128xf32>
    %c3_108 = arith.constant 3 : index
    %c0_109 = arith.constant 0 : index
    %99 = vector.load %arg6[%c3_108, %c0_109] : memref<8x1024xf32, #tpu.memory_space<vmem>>, vector<1x128xf32>
    tpu.vector_store %arg6[%c3_108, %c0_109], %98 {strides = array<i32>} : memref<8x1024xf32, #tpu.memory_space<vmem>>, vector<1x128xf32>,
    %c3_110 = arith.constant 3 : index
    %c1_111 = arith.constant 1 : index
    %100 = memref.load %arg1[%c3_110, %c1_111] : memref<8x8xi32, #tpu.memory_space<smem>>
    %101 = arith.index_cast %100 : i32 to index
    %c0_112 = arith.constant 0 : index
    %102 = vector.load %arg2[%101, %c0_112] : memref<32x128xf32, #tpu.memory_space<vmem>>, vector<1x128xf32>
    %c3_113 = arith.constant 3 : index
    %c128_114 = arith.constant 128 : index
    %103 = vector.load %arg6[%c3_113, %c128_114] : memref<8x1024xf32, #tpu.memory_space<vmem>>, vector<1x128xf32>
    tpu.vector_store %arg6[%c3_113, %c128_114], %102 {strides = array<i32>} : memref<8x1024xf32, #tpu.memory_space<vmem>>, vector<1x128xf32>,
    %c3_115 = arith.constant 3 : index
    %c2_116 = arith.constant 2 : index
    %104 = memref.load %arg1[%c3_115, %c2_116] : memref<8x8xi32, #tpu.memory_space<smem>>
    %105 = arith.index_cast %104 : i32 to index
    %c0_117 = arith.constant 0 : index
    %106 = vector.load %arg2[%105, %c0_117] : memref<32x128xf32, #tpu.memory_space<vmem>>, vector<1x128xf32>
    %c3_118 = arith.constant 3 : index
    %c256_119 = arith.constant 256 : index
    %107 = vector.load %arg6[%c3_118, %c256_119] : memref<8x1024xf32, #tpu.memory_space<vmem>>, vector<1x128xf32>
    tpu.vector_store %arg6[%c3_118, %c256_119], %106 {strides = array<i32>} : memref<8x1024xf32, #tpu.memory_space<vmem>>, vector<1x128xf32>,
    %c3_120 = arith.constant 3 : index
    %c3_121 = arith.constant 3 : index
    %108 = memref.load %arg1[%c3_120, %c3_121] : memref<8x8xi32, #tpu.memory_space<smem>>
    %109 = arith.index_cast %108 : i32 to index
    %c0_122 = arith.constant 0 : index
    %110 = vector.load %arg2[%109, %c0_122] : memref<32x128xf32, #tpu.memory_space<vmem>>, vector<1x128xf32>
    %c3_123 = arith.constant 3 : index
    %c384_124 = arith.constant 384 : index
    %111 = vector.load %arg6[%c3_123, %c384_124] : memref<8x1024xf32, #tpu.memory_space<vmem>>, vector<1x128xf32>
    tpu.vector_store %arg6[%c3_123, %c384_124], %110 {strides = array<i32>} : memref<8x1024xf32, #tpu.memory_space<vmem>>, vector<1x128xf32>,
    %c3_125 = arith.constant 3 : index
    %c4_126 = arith.constant 4 : index
    %112 = memref.load %arg1[%c3_125, %c4_126] : memref<8x8xi32, #tpu.memory_space<smem>>
    %113 = arith.index_cast %112 : i32 to index
    %c0_127 = arith.constant 0 : index
    %114 = vector.load %arg2[%113, %c0_127] : memref<32x128xf32, #tpu.memory_space<vmem>>, vector<1x128xf32>
    %c3_128 = arith.constant 3 : index
    %c512_129 = arith.constant 512 : index
    %115 = vector.load %arg6[%c3_128, %c512_129] : memref<8x1024xf32, #tpu.memory_space<vmem>>, vector<1x128xf32>
    tpu.vector_store %arg6[%c3_128, %c512_129], %114 {strides = array<i32>} : memref<8x1024xf32, #tpu.memory_space<vmem>>, vector<1x128xf32>,
    %c3_130 = arith.constant 3 : index
    %c5_131 = arith.constant 5 : index
    %116 = memref.load %arg1[%c3_130, %c5_131] : memref<8x8xi32, #tpu.memory_space<smem>>
    %117 = arith.index_cast %116 : i32 to index
    %c0_132 = arith.constant 0 : index
    %118 = vector.load %arg2[%117, %c0_132] : memref<32x128xf32, #tpu.memory_space<vmem>>, vector<1x128xf32>
    %c3_133 = arith.constant 3 : index
    %c640_134 = arith.constant 640 : index
    %119 = vector.load %arg6[%c3_133, %c640_134] : memref<8x1024xf32, #tpu.memory_space<vmem>>, vector<1x128xf32>
    tpu.vector_store %arg6[%c3_133, %c640_134], %118 {strides = array<i32>} : memref<8x1024xf32, #tpu.memory_space<vmem>>, vector<1x128xf32>,
    %c3_135 = arith.constant 3 : index
    %c6_136 = arith.constant 6 : index
    %120 = memref.load %arg1[%c3_135, %c6_136] : memref<8x8xi32, #tpu.memory_space<smem>>
    %121 = arith.index_cast %120 : i32 to index
    %c0_137 = arith.constant 0 : index
    %122 = vector.load %arg2[%121, %c0_137] : memref<32x128xf32, #tpu.memory_space<vmem>>, vector<1x128xf32>
    %c3_138 = arith.constant 3 : index
    %c768_139 = arith.constant 768 : index
    %123 = vector.load %arg6[%c3_138, %c768_139] : memref<8x1024xf32, #tpu.memory_space<vmem>>, vector<1x128xf32>
    tpu.vector_store %arg6[%c3_138, %c768_139], %122 {strides = array<i32>} : memref<8x1024xf32, #tpu.memory_space<vmem>>, vector<1x128xf32>,
    %c3_140 = arith.constant 3 : index
    %c7_141 = arith.constant 7 : index
    %124 = memref.load %arg1[%c3_140, %c7_141] : memref<8x8xi32, #tpu.memory_space<smem>>
    %125 = arith.index_cast %124 : i32 to index
    %c0_142 = arith.constant 0 : index
    %126 = vector.load %arg2[%125, %c0_142] : memref<32x128xf32, #tpu.memory_space<vmem>>, vector<1x128xf32>
    %c3_143 = arith.constant 3 : index
    %c896_144 = arith.constant 896 : index
    %127 = vector.load %arg6[%c3_143, %c896_144] : memref<8x1024xf32, #tpu.memory_space<vmem>>, vector<1x128xf32>
    tpu.vector_store %arg6[%c3_143, %c896_144], %126 {strides = array<i32>} : memref<8x1024xf32, #tpu.memory_space<vmem>>, vector<1x128xf32>,
    %c4_145 = arith.constant 4 : index
    %c0_146 = arith.constant 0 : index
    %128 = memref.load %arg1[%c4_145, %c0_146] : memref<8x8xi32, #tpu.memory_space<smem>>
    %129 = arith.index_cast %128 : i32 to index
    %c0_147 = arith.constant 0 : index
    %130 = vector.load %arg2[%129, %c0_147] : memref<32x128xf32, #tpu.memory_space<vmem>>, vector<1x128xf32>
    %c4_148 = arith.constant 4 : index
    %c0_149 = arith.constant 0 : index
    %131 = vector.load %arg6[%c4_148, %c0_149] : memref<8x1024xf32, #tpu.memory_space<vmem>>, vector<1x128xf32>
    tpu.vector_store %arg6[%c4_148, %c0_149], %130 {strides = array<i32>} : memref<8x1024xf32, #tpu.memory_space<vmem>>, vector<1x128xf32>,
    %c4_150 = arith.constant 4 : index
    %c1_151 = arith.constant 1 : index
    %132 = memref.load %arg1[%c4_150, %c1_151] : memref<8x8xi32, #tpu.memory_space<smem>>
    %133 = arith.index_cast %132 : i32 to index
    %c0_152 = arith.constant 0 : index
    %134 = vector.load %arg2[%133, %c0_152] : memref<32x128xf32, #tpu.memory_space<vmem>>, vector<1x128xf32>
    %c4_153 = arith.constant 4 : index
    %c128_154 = arith.constant 128 : index
    %135 = vector.load %arg6[%c4_153, %c128_154] : memref<8x1024xf32, #tpu.memory_space<vmem>>, vector<1x128xf32>
    tpu.vector_store %arg6[%c4_153, %c128_154], %134 {strides = array<i32>} : memref<8x1024xf32, #tpu.memory_space<vmem>>, vector<1x128xf32>,
    %c4_155 = arith.constant 4 : index
    %c2_156 = arith.constant 2 : index
    %136 = memref.load %arg1[%c4_155, %c2_156] : memref<8x8xi32, #tpu.memory_space<smem>>
    %137 = arith.index_cast %136 : i32 to index
    %c0_157 = arith.constant 0 : index
    %138 = vector.load %arg2[%137, %c0_157] : memref<32x128xf32, #tpu.memory_space<vmem>>, vector<1x128xf32>
    %c4_158 = arith.constant 4 : index
    %c256_159 = arith.constant 256 : index
    %139 = vector.load %arg6[%c4_158, %c256_159] : memref<8x1024xf32, #tpu.memory_space<vmem>>, vector<1x128xf32>
    tpu.vector_store %arg6[%c4_158, %c256_159], %138 {strides = array<i32>} : memref<8x1024xf32, #tpu.memory_space<vmem>>, vector<1x128xf32>,
    %c4_160 = arith.constant 4 : index
    %c3_161 = arith.constant 3 : index
    %140 = memref.load %arg1[%c4_160, %c3_161] : memref<8x8xi32, #tpu.memory_space<smem>>
    %141 = arith.index_cast %140 : i32 to index
    %c0_162 = arith.constant 0 : index
    %142 = vector.load %arg2[%141, %c0_162] : memref<32x128xf32, #tpu.memory_space<vmem>>, vector<1x128xf32>
    %c4_163 = arith.constant 4 : index
    %c384_164 = arith.constant 384 : index
    %143 = vector.load %arg6[%c4_163, %c384_164] : memref<8x1024xf32, #tpu.memory_space<vmem>>, vector<1x128xf32>
    tpu.vector_store %arg6[%c4_163, %c384_164], %142 {strides = array<i32>} : memref<8x1024xf32, #tpu.memory_space<vmem>>, vector<1x128xf32>,
    %c4_165 = arith.constant 4 : index
    %c4_166 = arith.constant 4 : index
    %144 = memref.load %arg1[%c4_165, %c4_166] : memref<8x8xi32, #tpu.memory_space<smem>>
    %145 = arith.index_cast %144 : i32 to index
    %c0_167 = arith.constant 0 : index
    %146 = vector.load %arg2[%145, %c0_167] : memref<32x128xf32, #tpu.memory_space<vmem>>, vector<1x128xf32>
    %c4_168 = arith.constant 4 : index
    %c512_169 = arith.constant 512 : index
    %147 = vector.load %arg6[%c4_168, %c512_169] : memref<8x1024xf32, #tpu.memory_space<vmem>>, vector<1x128xf32>
    tpu.vector_store %arg6[%c4_168, %c512_169], %146 {strides = array<i32>} : memref<8x1024xf32, #tpu.memory_space<vmem>>, vector<1x128xf32>,
    %c4_170 = arith.constant 4 : index
    %c5_171 = arith.constant 5 : index
    %148 = memref.load %arg1[%c4_170, %c5_171] : memref<8x8xi32, #tpu.memory_space<smem>>
    %149 = arith.index_cast %148 : i32 to index
    %c0_172 = arith.constant 0 : index
    %150 = vector.load %arg2[%149, %c0_172] : memref<32x128xf32, #tpu.memory_space<vmem>>, vector<1x128xf32>
    %c4_173 = arith.constant 4 : index
    %c640_174 = arith.constant 640 : index
    %151 = vector.load %arg6[%c4_173, %c640_174] : memref<8x1024xf32, #tpu.memory_space<vmem>>, vector<1x128xf32>
    tpu.vector_store %arg6[%c4_173, %c640_174], %150 {strides = array<i32>} : memref<8x1024xf32, #tpu.memory_space<vmem>>, vector<1x128xf32>,
    %c4_175 = arith.constant 4 : index
    %c6_176 = arith.constant 6 : index
    %152 = memref.load %arg1[%c4_175, %c6_176] : memref<8x8xi32, #tpu.memory_space<smem>>
    %153 = arith.index_cast %152 : i32 to index
    %c0_177 = arith.constant 0 : index
    %154 = vector.load %arg2[%153, %c0_177] : memref<32x128xf32, #tpu.memory_space<vmem>>, vector<1x128xf32>
    %c4_178 = arith.constant 4 : index
    %c768_179 = arith.constant 768 : index
    %155 = vector.load %arg6[%c4_178, %c768_179] : memref<8x1024xf32, #tpu.memory_space<vmem>>, vector<1x128xf32>
    tpu.vector_store %arg6[%c4_178, %c768_179], %154 {strides = array<i32>} : memref<8x1024xf32, #tpu.memory_space<vmem>>, vector<1x128xf32>,
    %c4_180 = arith.constant 4 : index
    %c7_181 = arith.constant 7 : index
    %156 = memref.load %arg1[%c4_180, %c7_181] : memref<8x8xi32, #tpu.memory_space<smem>>
    %157 = arith.index_cast %156 : i32 to index
    %c0_182 = arith.constant 0 : index
    %158 = vector.load %arg2[%157, %c0_182] : memref<32x128xf32, #tpu.memory_space<vmem>>, vector<1x128xf32>
    %c4_183 = arith.constant 4 : index
    %c896_184 = arith.constant 896 : index
    %159 = vector.load %arg6[%c4_183, %c896_184] : memref<8x1024xf32, #tpu.memory_space<vmem>>, vector<1x128xf32>
    tpu.vector_store %arg6[%c4_183, %c896_184], %158 {strides = array<i32>} : memref<8x1024xf32, #tpu.memory_space<vmem>>, vector<1x128xf32>,
    %c5_185 = arith.constant 5 : index
    %c0_186 = arith.constant 0 : index
    %160 = memref.load %arg1[%c5_185, %c0_186] : memref<8x8xi32, #tpu.memory_space<smem>>
    %161 = arith.index_cast %160 : i32 to index
    %c0_187 = arith.constant 0 : index
    %162 = vector.load %arg2[%161, %c0_187] : memref<32x128xf32, #tpu.memory_space<vmem>>, vector<1x128xf32>
    %c5_188 = arith.constant 5 : index
    %c0_189 = arith.constant 0 : index
    %163 = vector.load %arg6[%c5_188, %c0_189] : memref<8x1024xf32, #tpu.memory_space<vmem>>, vector<1x128xf32>
    tpu.vector_store %arg6[%c5_188, %c0_189], %162 {strides = array<i32>} : memref<8x1024xf32, #tpu.memory_space<vmem>>, vector<1x128xf32>,
    %c5_190 = arith.constant 5 : index
    %c1_191 = arith.constant 1 : index
    %164 = memref.load %arg1[%c5_190, %c1_191] : memref<8x8xi32, #tpu.memory_space<smem>>
    %165 = arith.index_cast %164 : i32 to index
    %c0_192 = arith.constant 0 : index
    %166 = vector.load %arg2[%165, %c0_192] : memref<32x128xf32, #tpu.memory_space<vmem>>, vector<1x128xf32>
    %c5_193 = arith.constant 5 : index
    %c128_194 = arith.constant 128 : index
    %167 = vector.load %arg6[%c5_193, %c128_194] : memref<8x1024xf32, #tpu.memory_space<vmem>>, vector<1x128xf32>
    tpu.vector_store %arg6[%c5_193, %c128_194], %166 {strides = array<i32>} : memref<8x1024xf32, #tpu.memory_space<vmem>>, vector<1x128xf32>,
    %c5_195 = arith.constant 5 : index
    %c2_196 = arith.constant 2 : index
    %168 = memref.load %arg1[%c5_195, %c2_196] : memref<8x8xi32, #tpu.memory_space<smem>>
    %169 = arith.index_cast %168 : i32 to index
    %c0_197 = arith.constant 0 : index
    %170 = vector.load %arg2[%169, %c0_197] : memref<32x128xf32, #tpu.memory_space<vmem>>, vector<1x128xf32>
    %c5_198 = arith.constant 5 : index
    %c256_199 = arith.constant 256 : index
    %171 = vector.load %arg6[%c5_198, %c256_199] : memref<8x1024xf32, #tpu.memory_space<vmem>>, vector<1x128xf32>
    tpu.vector_store %arg6[%c5_198, %c256_199], %170 {strides = array<i32>} : memref<8x1024xf32, #tpu.memory_space<vmem>>, vector<1x128xf32>,
    %c5_200 = arith.constant 5 : index
    %c3_201 = arith.constant 3 : index
    %172 = memref.load %arg1[%c5_200, %c3_201] : memref<8x8xi32, #tpu.memory_space<smem>>
    %173 = arith.index_cast %172 : i32 to index
    %c0_202 = arith.constant 0 : index
    %174 = vector.load %arg2[%173, %c0_202] : memref<32x128xf32, #tpu.memory_space<vmem>>, vector<1x128xf32>
    %c5_203 = arith.constant 5 : index
    %c384_204 = arith.constant 384 : index
    %175 = vector.load %arg6[%c5_203, %c384_204] : memref<8x1024xf32, #tpu.memory_space<vmem>>, vector<1x128xf32>
    tpu.vector_store %arg6[%c5_203, %c384_204], %174 {strides = array<i32>} : memref<8x1024xf32, #tpu.memory_space<vmem>>, vector<1x128xf32>,
    %c5_205 = arith.constant 5 : index
    %c4_206 = arith.constant 4 : index
    %176 = memref.load %arg1[%c5_205, %c4_206] : memref<8x8xi32, #tpu.memory_space<smem>>
    %177 = arith.index_cast %176 : i32 to index
    %c0_207 = arith.constant 0 : index
    %178 = vector.load %arg2[%177, %c0_207] : memref<32x128xf32, #tpu.memory_space<vmem>>, vector<1x128xf32>
    %c5_208 = arith.constant 5 : index
    %c512_209 = arith.constant 512 : index
    %179 = vector.load %arg6[%c5_208, %c512_209] : memref<8x1024xf32, #tpu.memory_space<vmem>>, vector<1x128xf32>
    tpu.vector_store %arg6[%c5_208, %c512_209], %178 {strides = array<i32>} : memref<8x1024xf32, #tpu.memory_space<vmem>>, vector<1x128xf32>,
    %c5_210 = arith.constant 5 : index
    %c5_211 = arith.constant 5 : index
    %180 = memref.load %arg1[%c5_210, %c5_211] : memref<8x8xi32, #tpu.memory_space<smem>>
    %181 = arith.index_cast %180 : i32 to index
    %c0_212 = arith.constant 0 : index
    %182 = vector.load %arg2[%181, %c0_212] : memref<32x128xf32, #tpu.memory_space<vmem>>, vector<1x128xf32>
    %c5_213 = arith.constant 5 : index
    %c640_214 = arith.constant 640 : index
    %183 = vector.load %arg6[%c5_213, %c640_214] : memref<8x1024xf32, #tpu.memory_space<vmem>>, vector<1x128xf32>
    tpu.vector_store %arg6[%c5_213, %c640_214], %182 {strides = array<i32>} : memref<8x1024xf32, #tpu.memory_space<vmem>>, vector<1x128xf32>,
    %c5_215 = arith.constant 5 : index
    %c6_216 = arith.constant 6 : index
    %184 = memref.load %arg1[%c5_215, %c6_216] : memref<8x8xi32, #tpu.memory_space<smem>>
    %185 = arith.index_cast %184 : i32 to index
    %c0_217 = arith.constant 0 : index
    %186 = vector.load %arg2[%185, %c0_217] : memref<32x128xf32, #tpu.memory_space<vmem>>, vector<1x128xf32>
    %c5_218 = arith.constant 5 : index
    %c768_219 = arith.constant 768 : index
    %187 = vector.load %arg6[%c5_218, %c768_219] : memref<8x1024xf32, #tpu.memory_space<vmem>>, vector<1x128xf32>
    tpu.vector_store %arg6[%c5_218, %c768_219], %186 {strides = array<i32>} : memref<8x1024xf32, #tpu.memory_space<vmem>>, vector<1x128xf32>,
    %c5_220 = arith.constant 5 : index
    %c7_221 = arith.constant 7 : index
    %188 = memref.load %arg1[%c5_220, %c7_221] : memref<8x8xi32, #tpu.memory_space<smem>>
    %189 = arith.index_cast %188 : i32 to index
    %c0_222 = arith.constant 0 : index
    %190 = vector.load %arg2[%189, %c0_222] : memref<32x128xf32, #tpu.memory_space<vmem>>, vector<1x128xf32>
    %c5_223 = arith.constant 5 : index
    %c896_224 = arith.constant 896 : index
    %191 = vector.load %arg6[%c5_223, %c896_224] : memref<8x1024xf32, #tpu.memory_space<vmem>>, vector<1x128xf32>
    tpu.vector_store %arg6[%c5_223, %c896_224], %190 {strides = array<i32>} : memref<8x1024xf32, #tpu.memory_space<vmem>>, vector<1x128xf32>,
    %c6_225 = arith.constant 6 : index
    %c0_226 = arith.constant 0 : index
    %192 = memref.load %arg1[%c6_225, %c0_226] : memref<8x8xi32, #tpu.memory_space<smem>>
    %193 = arith.index_cast %192 : i32 to index
    %c0_227 = arith.constant 0 : index
    %194 = vector.load %arg2[%193, %c0_227] : memref<32x128xf32, #tpu.memory_space<vmem>>, vector<1x128xf32>
    %c6_228 = arith.constant 6 : index
    %c0_229 = arith.constant 0 : index
    %195 = vector.load %arg6[%c6_228, %c0_229] : memref<8x1024xf32, #tpu.memory_space<vmem>>, vector<1x128xf32>
    tpu.vector_store %arg6[%c6_228, %c0_229], %194 {strides = array<i32>} : memref<8x1024xf32, #tpu.memory_space<vmem>>, vector<1x128xf32>,
    %c6_230 = arith.constant 6 : index
    %c1_231 = arith.constant 1 : index
    %196 = memref.load %arg1[%c6_230, %c1_231] : memref<8x8xi32, #tpu.memory_space<smem>>
    %197 = arith.index_cast %196 : i32 to index
    %c0_232 = arith.constant 0 : index
    %198 = vector.load %arg2[%197, %c0_232] : memref<32x128xf32, #tpu.memory_space<vmem>>, vector<1x128xf32>
    %c6_233 = arith.constant 6 : index
    %c128_234 = arith.constant 128 : index
    %199 = vector.load %arg6[%c6_233, %c128_234] : memref<8x1024xf32, #tpu.memory_space<vmem>>, vector<1x128xf32>
    tpu.vector_store %arg6[%c6_233, %c128_234], %198 {strides = array<i32>} : memref<8x1024xf32, #tpu.memory_space<vmem>>, vector<1x128xf32>,
    %c6_235 = arith.constant 6 : index
    %c2_236 = arith.constant 2 : index
    %200 = memref.load %arg1[%c6_235, %c2_236] : memref<8x8xi32, #tpu.memory_space<smem>>
    %201 = arith.index_cast %200 : i32 to index
    %c0_237 = arith.constant 0 : index
    %202 = vector.load %arg2[%201, %c0_237] : memref<32x128xf32, #tpu.memory_space<vmem>>, vector<1x128xf32>
    %c6_238 = arith.constant 6 : index
    %c256_239 = arith.constant 256 : index
    %203 = vector.load %arg6[%c6_238, %c256_239] : memref<8x1024xf32, #tpu.memory_space<vmem>>, vector<1x128xf32>
    tpu.vector_store %arg6[%c6_238, %c256_239], %202 {strides = array<i32>} : memref<8x1024xf32, #tpu.memory_space<vmem>>, vector<1x128xf32>,
    %c6_240 = arith.constant 6 : index
    %c3_241 = arith.constant 3 : index
    %204 = memref.load %arg1[%c6_240, %c3_241] : memref<8x8xi32, #tpu.memory_space<smem>>
    %205 = arith.index_cast %204 : i32 to index
    %c0_242 = arith.constant 0 : index
    %206 = vector.load %arg2[%205, %c0_242] : memref<32x128xf32, #tpu.memory_space<vmem>>, vector<1x128xf32>
    %c6_243 = arith.constant 6 : index
    %c384_244 = arith.constant 384 : index
    %207 = vector.load %arg6[%c6_243, %c384_244] : memref<8x1024xf32, #tpu.memory_space<vmem>>, vector<1x128xf32>
    tpu.vector_store %arg6[%c6_243, %c384_244], %206 {strides = array<i32>} : memref<8x1024xf32, #tpu.memory_space<vmem>>, vector<1x128xf32>,
    %c6_245 = arith.constant 6 : index
    %c4_246 = arith.constant 4 : index
    %208 = memref.load %arg1[%c6_245, %c4_246] : memref<8x8xi32, #tpu.memory_space<smem>>
    %209 = arith.index_cast %208 : i32 to index
    %c0_247 = arith.constant 0 : index
    %210 = vector.load %arg2[%209, %c0_247] : memref<32x128xf32, #tpu.memory_space<vmem>>, vector<1x128xf32>
    %c6_248 = arith.constant 6 : index
    %c512_249 = arith.constant 512 : index
    %211 = vector.load %arg6[%c6_248, %c512_249] : memref<8x1024xf32, #tpu.memory_space<vmem>>, vector<1x128xf32>
    tpu.vector_store %arg6[%c6_248, %c512_249], %210 {strides = array<i32>} : memref<8x1024xf32, #tpu.memory_space<vmem>>, vector<1x128xf32>,
    %c6_250 = arith.constant 6 : index
    %c5_251 = arith.constant 5 : index
    %212 = memref.load %arg1[%c6_250, %c5_251] : memref<8x8xi32, #tpu.memory_space<smem>>
    %213 = arith.index_cast %212 : i32 to index
    %c0_252 = arith.constant 0 : index
    %214 = vector.load %arg2[%213, %c0_252] : memref<32x128xf32, #tpu.memory_space<vmem>>, vector<1x128xf32>
    %c6_253 = arith.constant 6 : index
    %c640_254 = arith.constant 640 : index
    %215 = vector.load %arg6[%c6_253, %c640_254] : memref<8x1024xf32, #tpu.memory_space<vmem>>, vector<1x128xf32>
    tpu.vector_store %arg6[%c6_253, %c640_254], %214 {strides = array<i32>} : memref<8x1024xf32, #tpu.memory_space<vmem>>, vector<1x128xf32>,
    %c6_255 = arith.constant 6 : index
    %c6_256 = arith.constant 6 : index
    %216 = memref.load %arg1[%c6_255, %c6_256] : memref<8x8xi32, #tpu.memory_space<smem>>
    %217 = arith.index_cast %216 : i32 to index
    %c0_257 = arith.constant 0 : index
    %218 = vector.load %arg2[%217, %c0_257] : memref<32x128xf32, #tpu.memory_space<vmem>>, vector<1x128xf32>
    %c6_258 = arith.constant 6 : index
    %c768_259 = arith.constant 768 : index
    %219 = vector.load %arg6[%c6_258, %c768_259] : memref<8x1024xf32, #tpu.memory_space<vmem>>, vector<1x128xf32>
    tpu.vector_store %arg6[%c6_258, %c768_259], %218 {strides = array<i32>} : memref<8x1024xf32, #tpu.memory_space<vmem>>, vector<1x128xf32>,
    %c6_260 = arith.constant 6 : index
    %c7_261 = arith.constant 7 : index
    %220 = memref.load %arg1[%c6_260, %c7_261] : memref<8x8xi32, #tpu.memory_space<smem>>
    %221 = arith.index_cast %220 : i32 to index
    %c0_262 = arith.constant 0 : index
    %222 = vector.load %arg2[%221, %c0_262] : memref<32x128xf32, #tpu.memory_space<vmem>>, vector<1x128xf32>
    %c6_263 = arith.constant 6 : index
    %c896_264 = arith.constant 896 : index
    %223 = vector.load %arg6[%c6_263, %c896_264] : memref<8x1024xf32, #tpu.memory_space<vmem>>, vector<1x128xf32>
    tpu.vector_store %arg6[%c6_263, %c896_264], %222 {strides = array<i32>} : memref<8x1024xf32, #tpu.memory_space<vmem>>, vector<1x128xf32>,
    %c7_265 = arith.constant 7 : index
    %c0_266 = arith.constant 0 : index
    %224 = memref.load %arg1[%c7_265, %c0_266] : memref<8x8xi32, #tpu.memory_space<smem>>
    %225 = arith.index_cast %224 : i32 to index
    %c0_267 = arith.constant 0 : index
    %226 = vector.load %arg2[%225, %c0_267] : memref<32x128xf32, #tpu.memory_space<vmem>>, vector<1x128xf32>
    %c7_268 = arith.constant 7 : index
    %c0_269 = arith.constant 0 : index
    %227 = vector.load %arg6[%c7_268, %c0_269] : memref<8x1024xf32, #tpu.memory_space<vmem>>, vector<1x128xf32>
    tpu.vector_store %arg6[%c7_268, %c0_269], %226 {strides = array<i32>} : memref<8x1024xf32, #tpu.memory_space<vmem>>, vector<1x128xf32>,
    %c7_270 = arith.constant 7 : index
    %c1_271 = arith.constant 1 : index
    %228 = memref.load %arg1[%c7_270, %c1_271] : memref<8x8xi32, #tpu.memory_space<smem>>
    %229 = arith.index_cast %228 : i32 to index
    %c0_272 = arith.constant 0 : index
    %230 = vector.load %arg2[%229, %c0_272] : memref<32x128xf32, #tpu.memory_space<vmem>>, vector<1x128xf32>
    %c7_273 = arith.constant 7 : index
    %c128_274 = arith.constant 128 : index
    %231 = vector.load %arg6[%c7_273, %c128_274] : memref<8x1024xf32, #tpu.memory_space<vmem>>, vector<1x128xf32>
    tpu.vector_store %arg6[%c7_273, %c128_274], %230 {strides = array<i32>} : memref<8x1024xf32, #tpu.memory_space<vmem>>, vector<1x128xf32>,
    %c7_275 = arith.constant 7 : index
    %c2_276 = arith.constant 2 : index
    %232 = memref.load %arg1[%c7_275, %c2_276] : memref<8x8xi32, #tpu.memory_space<smem>>
    %233 = arith.index_cast %232 : i32 to index
    %c0_277 = arith.constant 0 : index
    %234 = vector.load %arg2[%233, %c0_277] : memref<32x128xf32, #tpu.memory_space<vmem>>, vector<1x128xf32>
    %c7_278 = arith.constant 7 : index
    %c256_279 = arith.constant 256 : index
    %235 = vector.load %arg6[%c7_278, %c256_279] : memref<8x1024xf32, #tpu.memory_space<vmem>>, vector<1x128xf32>
    tpu.vector_store %arg6[%c7_278, %c256_279], %234 {strides = array<i32>} : memref<8x1024xf32, #tpu.memory_space<vmem>>, vector<1x128xf32>,
    %c7_280 = arith.constant 7 : index
    %c3_281 = arith.constant 3 : index
    %236 = memref.load %arg1[%c7_280, %c3_281] : memref<8x8xi32, #tpu.memory_space<smem>>
    %237 = arith.index_cast %236 : i32 to index
    %c0_282 = arith.constant 0 : index
    %238 = vector.load %arg2[%237, %c0_282] : memref<32x128xf32, #tpu.memory_space<vmem>>, vector<1x128xf32>
    %c7_283 = arith.constant 7 : index
    %c384_284 = arith.constant 384 : index
    %239 = vector.load %arg6[%c7_283, %c384_284] : memref<8x1024xf32, #tpu.memory_space<vmem>>, vector<1x128xf32>
    tpu.vector_store %arg6[%c7_283, %c384_284], %238 {strides = array<i32>} : memref<8x1024xf32, #tpu.memory_space<vmem>>, vector<1x128xf32>,
    %c7_285 = arith.constant 7 : index
    %c4_286 = arith.constant 4 : index
    %240 = memref.load %arg1[%c7_285, %c4_286] : memref<8x8xi32, #tpu.memory_space<smem>>
    %241 = arith.index_cast %240 : i32 to index
    %c0_287 = arith.constant 0 : index
    %242 = vector.load %arg2[%241, %c0_287] : memref<32x128xf32, #tpu.memory_space<vmem>>, vector<1x128xf32>
    %c7_288 = arith.constant 7 : index
    %c512_289 = arith.constant 512 : index
    %243 = vector.load %arg6[%c7_288, %c512_289] : memref<8x1024xf32, #tpu.memory_space<vmem>>, vector<1x128xf32>
    tpu.vector_store %arg6[%c7_288, %c512_289], %242 {strides = array<i32>} : memref<8x1024xf32, #tpu.memory_space<vmem>>, vector<1x128xf32>,
    %c7_290 = arith.constant 7 : index
    %c5_291 = arith.constant 5 : index
    %244 = memref.load %arg1[%c7_290, %c5_291] : memref<8x8xi32, #tpu.memory_space<smem>>
    %245 = arith.index_cast %244 : i32 to index
    %c0_292 = arith.constant 0 : index
    %246 = vector.load %arg2[%245, %c0_292] : memref<32x128xf32, #tpu.memory_space<vmem>>, vector<1x128xf32>
    %c7_293 = arith.constant 7 : index
    %c640_294 = arith.constant 640 : index
    %247 = vector.load %arg6[%c7_293, %c640_294] : memref<8x1024xf32, #tpu.memory_space<vmem>>, vector<1x128xf32>
    tpu.vector_store %arg6[%c7_293, %c640_294], %246 {strides = array<i32>} : memref<8x1024xf32, #tpu.memory_space<vmem>>, vector<1x128xf32>,
    %c7_295 = arith.constant 7 : index
    %c6_296 = arith.constant 6 : index
    %248 = memref.load %arg1[%c7_295, %c6_296] : memref<8x8xi32, #tpu.memory_space<smem>>
    %249 = arith.index_cast %248 : i32 to index
    %c0_297 = arith.constant 0 : index
    %250 = vector.load %arg2[%249, %c0_297] : memref<32x128xf32, #tpu.memory_space<vmem>>, vector<1x128xf32>
    %c7_298 = arith.constant 7 : index
    %c768_299 = arith.constant 768 : index
    %251 = vector.load %arg6[%c7_298, %c768_299] : memref<8x1024xf32, #tpu.memory_space<vmem>>, vector<1x128xf32>
    tpu.vector_store %arg6[%c7_298, %c768_299], %250 {strides = array<i32>} : memref<8x1024xf32, #tpu.memory_space<vmem>>, vector<1x128xf32>,
    %c7_300 = arith.constant 7 : index
    %c7_301 = arith.constant 7 : index
    %252 = memref.load %arg1[%c7_300, %c7_301] : memref<8x8xi32, #tpu.memory_space<smem>>
    %253 = arith.index_cast %252 : i32 to index
    %c0_302 = arith.constant 0 : index
    %254 = vector.load %arg2[%253, %c0_302] : memref<32x128xf32, #tpu.memory_space<vmem>>, vector<1x128xf32>
    %c7_303 = arith.constant 7 : index
    %c896_304 = arith.constant 896 : index
    %255 = vector.load %arg6[%c7_303, %c896_304] : memref<8x1024xf32, #tpu.memory_space<vmem>>, vector<1x128xf32>
    tpu.vector_store %arg6[%c7_303, %c896_304], %254 {strides = array<i32>} : memref<8x1024xf32, #tpu.memory_space<vmem>>, vector<1x128xf32>,
    %c0_305 = arith.constant 0 : index
    %c0_306 = arith.constant 0 : index
    %256 = vector.load %arg6[%c0_305, %c0_306] : memref<8x1024xf32, #tpu.memory_space<vmem>>, vector<8x1024xf32>
    %257 = arith.truncf %256 : vector<8x1024xf32> to vector<8x1024xbf16>
    %c0_307 = arith.constant 0 : index
    %c0_308 = arith.constant 0 : index
    %258 = vector.load %arg3[%c0_307, %c0_308] : memref<1024x128xbf16, #tpu.memory_space<vmem>>, vector<1024x128xbf16>
    %cst = arith.constant dense<0.000000e+00> : vector<8x128xf32>
    %259 = tpu.matmul %257, %258, %cst {dimension_numbers = #tpu.dot_dimension_numbers<[1], [0], [0], [1], [0, 0, 1, 1], [], []>} : vector<8x1024xbf16>, vector<1024x128xbf16>, vector<8x128xf32> -> vector<8x128xf32>
    %c0_309 = arith.constant 0 : index
    %c0_310 = arith.constant 0 : index
    %260 = vector.load %arg4[%c0_309, %c0_310] : memref<1x128xf32, #tpu.memory_space<vmem>>, vector<1x128xf32>
    %261 = vector.broadcast %260 : vector<1x128xf32> to vector<8x128xf32>
    %262 = arith.addf %259, %261 : vector<8x128xf32>
    %cst_311 = arith.constant 0.000000e+00 : f32
    %263 = vector.broadcast %cst_311 : f32 to vector<8x128xf32>
    %264 = arith.maximumf %262, %263 : vector<8x128xf32>
    %c0_312 = arith.constant 0 : index
    %c0_313 = arith.constant 0 : index
    %265 = vector.load %arg5[%c0_312, %c0_313] : memref<8x128xf32, #tpu.memory_space<vmem>>, vector<8x128xf32>
    tpu.vector_store %arg5[%c0_312, %c0_313], %264 {strides = array<i32>} : memref<8x128xf32, #tpu.memory_space<vmem>>, vector<8x128xf32>,
    return
  }
  func.func @transform_0(%arg0: i32, %arg1: memref<8x8xi32, #tpu.memory_space<smem>>) -> (i32, i32) {
    %c0_i32 = arith.constant 0 : i32
    %c0_i32_0 = arith.constant 0 : i32
    %c0_i32_1 = arith.constant 0 : i32
    return %c0_i32, %c0_i32_0 : i32, i32
  }
  func.func @transform_1(%arg0: i32, %arg1: memref<8x8xi32, #tpu.memory_space<smem>>) -> (i32, i32) {
    %c0_i32 = arith.constant 0 : i32
    %c0_i32_0 = arith.constant 0 : i32
    return %c0_i32, %arg0 : i32, i32
  }
  func.func @transform_2(%arg0: i32, %arg1: memref<8x8xi32, #tpu.memory_space<smem>>) -> (i32, i32) {
    %c0_i32 = arith.constant 0 : i32
    %c0_i32_0 = arith.constant 0 : i32
    return %c0_i32, %arg0 : i32, i32
  }
  func.func @transform_3(%arg0: i32, %arg1: memref<8x8xi32, #tpu.memory_space<smem>>) -> (i32, i32) {
    %c0_i32 = arith.constant 0 : i32
    %c0_i32_0 = arith.constant 0 : i32
    return %c0_i32, %arg0 : i32, i32
  }
}

</mosaic_0001>

<llo_original>
// kernel: tpu_custom_call.1
$region0: #{tpu_custom_call.1}
  #allocation0 [shape = 'u32[]', space=smem, size = 0x4, offset = 0x4, fixed_abs, tag = 'smem constant byte address 0x4 - core index']
  #allocation1 [shape = 'u32[144,128]{1,0:T(1,128)}', space=vmem, size = 0x12000, scoped, tag = 'internal scratch']
  #allocation2 [shape = 'f32[8,1024]{1,0:T(8,128)}', space=vmem, size = 0x8000, scoped, tag = 'scratch operand']
  #allocation3 [shape = 's32[1]{0}', space=sflag, size = 0x4, scoped, tag = 'scoped memory for tpu_custom_call.1']
  #allocation4 [shape = 'u8[4096]{0}', space=smem, size = 0x1000, scoped, tag = 'prefetched SMEM operand 0']
  %s0 = inlined_call_operand.hbm [shape: s32[8,8], index: 0, kind: input, shape index: {}]
  %s1 = inlined_call_operand.hbm [shape: f32[32,128], index: 1, kind: input, shape index: {}]
  %s2 = inlined_call_operand.hbm [shape: bf16[1024,128], index: 2, kind: input, shape index: {}]
  %s3 = inlined_call_operand.vmem [shape: f32[1,128], index: 3, kind: input, shape index: {}]
  %s4 = inlined_call_operand.hbm [shape: f32[8,128], index: 4, kind: output, shape index: {}]
  %s5 = sld [smem:[#allocation0]]
  $region30: #{tpu_custom_call.1} parent=0
    _
  %s7 = ssub.s32 1, %s5
  %s8 = scalar_select 0, %s7, %s5
  %10 = dma.hbm_to_smem %s0, 128, [#allocation4], [#allocation3]
  %11 = dma.done [#allocation3], 128
  %12 = sfence
  $region1: #{tpu_custom_call.1} parent=0
    #allocation5 [shape = 'u8[16384]{0}', space=vmem, size = 0x4000, scoped, tag = 'input window, operand 1, single buffered']
    #allocation6 [shape = 's32[1]{0}', space=sflag, size = 0x4, scoped, tag = 'scoped memory for tpu_custom_call.1']
    #allocation7 [shape = 's32[1]{0}', space=sflag, size = 0x4, scoped, tag = 'scoped memory for tpu_custom_call.1']
    #allocation8 [shape = 'u8[262144]{0}', space=vmem, size = 0x40000, scoped, tag = 'input window, operand 2, single buffered']
    #allocation9 [shape = 's32[1]{0}', space=sflag, size = 0x4, scoped, tag = 'scoped memory for tpu_custom_call.1']
    #allocation10 [shape = 'u8[4096]{0}', space=vmem, size = 0x1000, scoped, tag = 'output window, operand 0, single buffered']
    %13 = vsyncpa [#allocation6], 0
    %14 = vsyncpa [#allocation9], 0
    %15 = vsyncpa [#allocation7], 0
    // Predicated region
    $region2: #{tpu_custom_call.1} parent=1 // pred_check
      _
    $region3: #{tpu_custom_call.1} parent=1 // pred_check_branch
      %17 = sbr.rel (0) target = $region5
    $region4: #{tpu_custom_call.1} parent=1 // pred_region
      %s19 = ssub.s32 512, 512
      %20 = vsyncadd [#allocation6], %s19
      %s21 = sshll.u32 [#allocation5], 4
      %s22 = int_to_ptr.vmem [resolvable:$true] %s21
      %27 = dma.hbm_to_vmem [thread:$0]  %s1, 512, %s22, [#allocation6], 128, 128, 8
    $region5: #{tpu_custom_call.1} parent=1 // pred_fallthru
      _
    // Predicated region
    $region6: #{tpu_custom_call.1} parent=1 // pred_check
      _
    $region7: #{tpu_custom_call.1} parent=1 // pred_check_branch
      %29 = sbr.rel (0) target = $region9
    $region8: #{tpu_custom_call.1} parent=1 // pred_region
      %s31 = ssub.s32 8192, 8192
      %32 = vsyncadd [#allocation9], %s31
      %s33 = sshll.u32 [#allocation8], 4
      %s34 = int_to_ptr.vmem [resolvable:$true] %s33
      %39 = dma.hbm_to_vmem [thread:$0]  %s2, 8192, %s34, [#allocation9], 64, 64, 4
    $region9: #{tpu_custom_call.1} parent=1 // pred_fallthru
      _
    // Predicated region
    $region10: #{tpu_custom_call.1} parent=1 // pred_check
      _
    $region11: #{tpu_custom_call.1} parent=1 // pred_check_branch
      %41 = sbr.rel (0) target = $region13
    $region12: #{tpu_custom_call.1} parent=1 // pred_region
      _
    $region13: #{tpu_custom_call.1} parent=1 // pred_fallthru
      _
    // Predicated region
    $region14: #{tpu_custom_call.1} parent=1 // pred_check
      _
    $region15: #{tpu_custom_call.1} parent=1 // pred_check_branch
      %43 = sbr.rel (0) target = $region17
    $region16: #{tpu_custom_call.1} parent=1 // pred_region
      %44 = dma.done [#allocation6], 512
    $region17: #{tpu_custom_call.1} parent=1 // pred_fallthru
      _
    // Predicated region
    $region18: #{tpu_custom_call.1} parent=1 // pred_check
      _
    $region19: #{tpu_custom_call.1} parent=1 // pred_check_branch
      %46 = sbr.rel (0) target = $region21
    $region20: #{tpu_custom_call.1} parent=1 // pred_region
      %47 = dma.done [#allocation9], 8192
    $region21: #{tpu_custom_call.1} parent=1 // pred_fallthru
      _
    %s49 = sld [smem:[#allocation4]]
    %s50 = scalar_lea.vmem [#allocation5], %s49
    %v51 = vld [vmem:[%s50] sm:$0x1]
    %52 = vst [vmem:[#allocation2] sm:$0x1] %v51
    %s53 = sld [smem:[#allocation4 + $0x1]]
    %s54 = scalar_lea.vmem [#allocation5], %s53
    %v55 = vld [vmem:[%s54] sm:$0x1]
    %56 = vst [vmem:[#allocation2 + $0x8] sm:$0x1] %v55
    %s57 = sld [smem:[#allocation4 + $0x2]]
    %s58 = scalar_lea.vmem [#allocation5], %s57
    %v59 = vld [vmem:[%s58] sm:$0x1]
    %60 = vst [vmem:[#allocation2 + $0x10] sm:$0x1] %v59
    %s61 = sld [smem:[#allocation4 + $0x3]]
    %s62 = scalar_lea.vmem [#allocation5], %s61
    %v63 = vld [vmem:[%s62] sm:$0x1]
    %64 = vst [vmem:[#allocation2 + $0x18] sm:$0x1] %v63
    %s65 = sld [smem:[#allocation4 + $0x4]]
    %s66 = scalar_lea.vmem [#allocation5], %s65
    %v67 = vld [vmem:[%s66] sm:$0x1]
    %68 = vst [vmem:[#allocation2 + $0x20] sm:$0x1] %v67
    %s69 = sld [smem:[#allocation4 + $0x5]]
    %s70 = scalar_lea.vmem [#allocation5], %s69
    %v71 = vld [vmem:[%s70] sm:$0x1]
    %72 = vst [vmem:[#allocation2 + $0x28] sm:$0x1] %v71
    %s73 = sld [smem:[#allocation4 + $0x6]]
    %s74 = scalar_lea.vmem [#allocation5], %s73
    %v75 = vld [vmem:[%s74] sm:$0x1]
    %76 = vst [vmem:[#allocation2 + $0x30] sm:$0x1] %v75
    %s77 = sld [smem:[#allocation4 + $0x7]]
    %s78 = scalar_lea.vmem [#allocation5], %s77
    %v79 = vld [vmem:[%s78] sm:$0x1]
    %80 = vst [vmem:[#allocation2 + $0x38] sm:$0x1] %v79
    %s81 = sld [smem:[#allocation4 + $0x80]]
    %s82 = scalar_lea.vmem [#allocation5], %s81
    %v83 = vld [vmem:[%s82] sm:$0x1]
    %84 = vst [vmem:[#allocation2 + $0x1] sm:$0x1] %v83
    %s85 = sld [smem:[#allocation4 + $0x81]]
    %s86 = scalar_lea.vmem [#allocation5], %s85
    %v87 = vld [vmem:[%s86] sm:$0x1]
    %88 = vst [vmem:[#allocation2 + $0x9] sm:$0x1] %v87
    %s89 = sld [smem:[#allocation4 + $0x82]]
    %s90 = scalar_lea.vmem [#allocation5], %s89
    %v91 = vld [vmem:[%s90] sm:$0x1]
    %92 = vst [vmem:[#allocation2 + $0x11] sm:$0x1] %v91
    %s93 = sld [smem:[#allocation4 + $0x83]]
    %s94 = scalar_lea.vmem [#allocation5], %s93
    %v95 = vld [vmem:[%s94] sm:$0x1]
    %96 = vst [vmem:[#allocation2 + $0x19] sm:$0x1] %v95
    %s97 = sld [smem:[#allocation4 + $0x84]]
    %s98 = scalar_lea.vmem [#allocation5], %s97
    %v99 = vld [vmem:[%s98] sm:$0x1]
    %100 = vst [vmem:[#allocation2 + $0x21] sm:$0x1] %v99
    %s101 = sld [smem:[#allocation4 + $0x85]]
    %s102 = scalar_lea.vmem [#allocation5], %s101
    %v103 = vld [vmem:[%s102] sm:$0x1]
    %104 = vst [vmem:[#allocation2 + $0x29] sm:$0x1] %v103
    %s105 = sld [smem:[#allocation4 + $0x86]]
    %s106 = scalar_lea.vmem [#allocation5], %s105
    %v107 = vld [vmem:[%s106] sm:$0x1]
    %108 = vst [vmem:[#allocation2 + $0x31] sm:$0x1] %v107
    %s109 = sld [smem:[#allocation4 + $0x87]]
    %s110 = scalar_lea.vmem [#allocation5], %s109
    %v111 = vld [vmem:[%s110] sm:$0x1]
    %112 = vst [vmem:[#allocation2 + $0x39] sm:$0x1] %v111
    %s113 = sld [smem:[#allocation4 + $0x100]]
    %s114 = scalar_lea.vmem [#allocation5], %s113
    %v115 = vld [vmem:[%s114] sm:$0x1]
    %116 = vst [vmem:[#allocation2 + $0x2] sm:$0x1] %v115
    %s117 = sld [smem:[#allocation4 + $0x101]]
    %s118 = scalar_lea.vmem [#allocation5], %s117
    %v119 = vld [vmem:[%s118] sm:$0x1]
    %120 = vst [vmem:[#allocation2 + $0xa] sm:$0x1] %v119
    %s121 = sld [smem:[#allocation4 + $0x102]]
    %s122 = scalar_lea.vmem [#allocation5], %s121
    %v123 = vld [vmem:[%s122] sm:$0x1]
    %124 = vst [vmem:[#allocation2 + $0x12] sm:$0x1] %v123
    %s125 = sld [smem:[#allocation4 + $0x103]]
    %s126 = scalar_lea.vmem [#allocation5], %s125
    %v127 = vld [vmem:[%s126] sm:$0x1]
    %128 = vst [vmem:[#allocation2 + $0x1a] sm:$0x1] %v127
    %s129 = sld [smem:[#allocation4 + $0x104]]
    %s130 = scalar_lea.vmem [#allocation5], %s129
    %v131 = vld [vmem:[%s130] sm:$0x1]
    %132 = vst [vmem:[#allocation2 + $0x22] sm:$0x1] %v131
    %s133 = sld [smem:[#allocation4 + $0x105]]
    %s134 = scalar_lea.vmem [#allocation5], %s133
    %v135 = vld [vmem:[%s134] sm:$0x1]
    %136 = vst [vmem:[#allocation2 + $0x2a] sm:$0x1] %v135
    %s137 = sld [smem:[#allocation4 + $0x106]]
    %s138 = scalar_lea.vmem [#allocation5], %s137
    %v139 = vld [vmem:[%s138] sm:$0x1]
    %140 = vst [vmem:[#allocation2 + $0x32] sm:$0x1] %v139
    %s141 = sld [smem:[#allocation4 + $0x107]]
    %s142 = scalar_lea.vmem [#allocation5], %s141
    %v143 = vld [vmem:[%s142] sm:$0x1]
    %144 = vst [vmem:[#allocation2 + $0x3a] sm:$0x1] %v143
    %s145 = sld [smem:[#allocation4 + $0x180]]
    %s146 = scalar_lea.vmem [#allocation5], %s145
    %v147 = vld [vmem:[%s146] sm:$0x1]
    %148 = vst [vmem:[#allocation2 + $0x3] sm:$0x1] %v147
    %s149 = sld [smem:[#allocation4 + $0x181]]
    %s150 = scalar_lea.vmem [#allocation5], %s149
    %v151 = vld [vmem:[%s150] sm:$0x1]
    %152 = vst [vmem:[#allocation2 + $0xb] sm:$0x1] %v151
    %s153 = sld [smem:[#allocation4 + $0x182]]
    %s154 = scalar_lea.vmem [#allocation5], %s153
    %v155 = vld [vmem:[%s154] sm:$0x1]
    %156 = vst [vmem:[#allocation2 + $0x13] sm:$0x1] %v155
    %s157 = sld [smem:[#allocation4 + $0x183]]
    %s158 = scalar_lea.vmem [#allocation5], %s157
    %v159 = vld [vmem:[%s158] sm:$0x1]
    %160 = vst [vmem:[#allocation2 + $0x1b] sm:$0x1] %v159
    %s161 = sld [smem:[#allocation4 + $0x184]]
    %s162 = scalar_lea.vmem [#allocation5], %s161
    %v163 = vld [vmem:[%s162] sm:$0x1]
    %164 = vst [vmem:[#allocation2 + $0x23] sm:$0x1] %v163
    %s165 = sld [smem:[#allocation4 + $0x185]]
    %s166 = scalar_lea.vmem [#allocation5], %s165
    %v167 = vld [vmem:[%s166] sm:$0x1]
    %168 = vst [vmem:[#allocation2 + $0x2b] sm:$0x1] %v167
    %s169 = sld [smem:[#allocation4 + $0x186]]
    %s170 = scalar_lea.vmem [#allocation5], %s169
    %v171 = vld [vmem:[%s170] sm:$0x1]
    %172 = vst [vmem:[#allocation2 + $0x33] sm:$0x1] %v171
    %s173 = sld [smem:[#allocation4 + $0x187]]
    %s174 = scalar_lea.vmem [#allocation5], %s173
    %v175 = vld [vmem:[%s174] sm:$0x1]
    %176 = vst [vmem:[#allocation2 + $0x3b] sm:$0x1] %v175
    %s177 = sld [smem:[#allocation4 + $0x200]]
    %s178 = scalar_lea.vmem [#allocation5], %s177
    %v179 = vld [vmem:[%s178] sm:$0x1]
    %180 = vst [vmem:[#allocation2 + $0x4] sm:$0x1] %v179
    %s181 = sld [smem:[#allocation4 + $0x201]]
    %s182 = scalar_lea.vmem [#allocation5], %s181
    %v183 = vld [vmem:[%s182] sm:$0x1]
    %184 = vst [vmem:[#allocation2 + $0xc] sm:$0x1] %v183
    %s185 = sld [smem:[#allocation4 + $0x202]]
    %s186 = scalar_lea.vmem [#allocation5], %s185
    %v187 = vld [vmem:[%s186] sm:$0x1]
    %188 = vst [vmem:[#allocation2 + $0x14] sm:$0x1] %v187
    %s189 = sld [smem:[#allocation4 + $0x203]]
    %s190 = scalar_lea.vmem [#allocation5], %s189
    %v191 = vld [vmem:[%s190] sm:$0x1]
    %192 = vst [vmem:[#allocation2 + $0x1c] sm:$0x1] %v191
    %s193 = sld [smem:[#allocation4 + $0x204]]
    %s194 = scalar_lea.vmem [#allocation5], %s193
    %v195 = vld [vmem:[%s194] sm:$0x1]
    %196 = vst [vmem:[#allocation2 + $0x24] sm:$0x1] %v195
    %s197 = sld [smem:[#allocation4 + $0x205]]
    %s198 = scalar_lea.vmem [#allocation5], %s197
    %v199 = vld [vmem:[%s198] sm:$0x1]
    %200 = vst [vmem:[#allocation2 + $0x2c] sm:$0x1] %v199
    %s201 = sld [smem:[#allocation4 + $0x206]]
    %s202 = scalar_lea.vmem [#allocation5], %s201
    %v203 = vld [vmem:[%s202] sm:$0x1]
    %204 = vst [vmem:[#allocation2 + $0x34] sm:$0x1] %v203
    %s205 = sld [smem:[#allocation4 + $0x207]]
    %s206 = scalar_lea.vmem [#allocation5], %s205
    %v207 = vld [vmem:[%s206] sm:$0x1]
    %208 = vst [vmem:[#allocation2 + $0x3c] sm:$0x1] %v207
    %s209 = sld [smem:[#allocation4 + $0x280]]
    %s210 = scalar_lea.vmem [#allocation5], %s209
    %v211 = vld [vmem:[%s210] sm:$0x1]
    %212 = vst [vmem:[#allocation2 + $0x5] sm:$0x1] %v211
    %s213 = sld [smem:[#allocation4 + $0x281]]
    %s214 = scalar_lea.vmem [#allocation5], %s213
    %v215 = vld [vmem:[%s214] sm:$0x1]
    %216 = vst [vmem:[#allocation2 + $0xd] sm:$0x1] %v215
    %s217 = sld [smem:[#allocation4 + $0x282]]
    %s218 = scalar_lea.vmem [#allocation5], %s217
    %v219 = vld [vmem:[%s218] sm:$0x1]
    %220 = vst [vmem:[#allocation2 + $0x15] sm:$0x1] %v219
    %s221 = sld [smem:[#allocation4 + $0x283]]
    %s222 = scalar_lea.vmem [#allocation5], %s221
    %v223 = vld [vmem:[%s222] sm:$0x1]
    %224 = vst [vmem:[#allocation2 + $0x1d] sm:$0x1] %v223
    %s225 = sld [smem:[#allocation4 + $0x284]]
    %s226 = scalar_lea.vmem [#allocation5], %s225
    %v227 = vld [vmem:[%s226] sm:$0x1]
    %228 = vst [vmem:[#allocation2 + $0x25] sm:$0x1] %v227
    %s229 = sld [smem:[#allocation4 + $0x285]]
    %s230 = scalar_lea.vmem [#allocation5], %s229
    %v231 = vld [vmem:[%s230] sm:$0x1]
    %232 = vst [vmem:[#allocation2 + $0x2d] sm:$0x1] %v231
    %s233 = sld [smem:[#allocation4 + $0x286]]
    %s234 = scalar_lea.vmem [#allocation5], %s233
    %v235 = vld [vmem:[%s234] sm:$0x1]
    %236 = vst [vmem:[#allocation2 + $0x35] sm:$0x1] %v235
    %s237 = sld [smem:[#allocation4 + $0x287]]
    %s238 = scalar_lea.vmem [#allocation5], %s237
    %v239 = vld [vmem:[%s238] sm:$0x1]
    %240 = vst [vmem:[#allocation2 + $0x3d] sm:$0x1] %v239
    %s241 = sld [smem:[#allocation4 + $0x300]]
    %s242 = scalar_lea.vmem [#allocation5], %s241
    %v243 = vld [vmem:[%s242] sm:$0x1]
    %244 = vst [vmem:[#allocation2 + $0x6] sm:$0x1] %v243
    %s245 = sld [smem:[#allocation4 + $0x301]]
    %s246 = scalar_lea.vmem [#allocation5], %s245
    %v247 = vld [vmem:[%s246] sm:$0x1]
    %248 = vst [vmem:[#allocation2 + $0xe] sm:$0x1] %v247
    %s249 = sld [smem:[#allocation4 + $0x302]]
    %s250 = scalar_lea.vmem [#allocation5], %s249
    %v251 = vld [vmem:[%s250] sm:$0x1]
    %252 = vst [vmem:[#allocation2 + $0x16] sm:$0x1] %v251
    %s253 = sld [smem:[#allocation4 + $0x303]]
    %s254 = scalar_lea.vmem [#allocation5], %s253
    %v255 = vld [vmem:[%s254] sm:$0x1]
    %256 = vst [vmem:[#allocation2 + $0x1e] sm:$0x1] %v255
    %s257 = sld [smem:[#allocation4 + $0x304]]
    %s258 = scalar_lea.vmem [#allocation5], %s257
    %v259 = vld [vmem:[%s258] sm:$0x1]
    %260 = vst [vmem:[#allocation2 + $0x26] sm:$0x1] %v259
    %s261 = sld [smem:[#allocation4 + $0x305]]
    %s262 = scalar_lea.vmem [#allocation5], %s261
    %v263 = vld [vmem:[%s262] sm:$0x1]
    %264 = vst [vmem:[#allocation2 + $0x2e] sm:$0x1] %v263
    %s265 = sld [smem:[#allocation4 + $0x306]]
    %s266 = scalar_lea.vmem [#allocation5], %s265
    %v267 = vld [vmem:[%s266] sm:$0x1]
    %268 = vst [vmem:[#allocation2 + $0x36] sm:$0x1] %v267
    %s269 = sld [smem:[#allocation4 + $0x307]]
    %s270 = scalar_lea.vmem [#allocation5], %s269
    %v271 = vld [vmem:[%s270] sm:$0x1]
    %272 = vst [vmem:[#allocation2 + $0x3e] sm:$0x1] %v271
    %s273 = sld [smem:[#allocation4 + $0x380]]
    %s274 = scalar_lea.vmem [#allocation5], %s273
    %v275 = vld [vmem:[%s274] sm:$0x1]
    %276 = vst [vmem:[#allocation2 + $0x7] sm:$0x1] %v275
    %s277 = sld [smem:[#allocation4 + $0x381]]
    %s278 = scalar_lea.vmem [#allocation5], %s277
    %v279 = vld [vmem:[%s278] sm:$0x1]
    %280 = vst [vmem:[#allocation2 + $0xf] sm:$0x1] %v279
    %s281 = sld [smem:[#allocation4 + $0x382]]
    %s282 = scalar_lea.vmem [#allocation5], %s281
    %v283 = vld [vmem:[%s282] sm:$0x1]
    %284 = vst [vmem:[#allocation2 + $0x17] sm:$0x1] %v283
    %s285 = sld [smem:[#allocation4 + $0x383]]
    %s286 = scalar_lea.vmem [#allocation5], %s285
    %v287 = vld [vmem:[%s286] sm:$0x1]
    %288 = vst [vmem:[#allocation2 + $0x1f] sm:$0x1] %v287
    %s289 = sld [smem:[#allocation4 + $0x384]]
    %s290 = scalar_lea.vmem [#allocation5], %s289
    %v291 = vld [vmem:[%s290] sm:$0x1]
    %292 = vst [vmem:[#allocation2 + $0x27] sm:$0x1] %v291
    %s293 = sld [smem:[#allocation4 + $0x385]]
    %s294 = scalar_lea.vmem [#allocation5], %s293
    %v295 = vld [vmem:[%s294] sm:$0x1]
    %296 = vst [vmem:[#allocation2 + $0x2f] sm:$0x1] %v295
    %s297 = sld [smem:[#allocation4 + $0x386]]
    %s298 = scalar_lea.vmem [#allocation5], %s297
    %v299 = vld [vmem:[%s298] sm:$0x1]
    %300 = vst [vmem:[#allocation2 + $0x37] sm:$0x1] %v299
    %s301 = sld [smem:[#allocation4 + $0x387]]
    %s302 = scalar_lea.vmem [#allocation5], %s301
    %v303 = vld [vmem:[%s302] sm:$0x1]
    %304 = vst [vmem:[#allocation2 + $0x3f] sm:$0x1] %v303
    %v305 = vld [vmem:[#allocation2] sm:$0xff]
    %v306 = vld [vmem:[#allocation2 + $0x8] sm:$0xff]
    %v307 = vld [vmem:[#allocation2 + $0x10] sm:$0xff]
    %v308 = vld [vmem:[#allocation2 + $0x18] sm:$0xff]
    %v309 = vld [vmem:[#allocation2 + $0x20] sm:$0xff]
    %v310 = vld [vmem:[#allocation2 + $0x28] sm:$0xff]
    %v311 = vld [vmem:[#allocation2 + $0x30] sm:$0xff]
    %v312 = vld [vmem:[#allocation2 + $0x38] sm:$0xff]
    %v313 = vpack.c.bf16 %v305, %v305
    %v314 = vpack.c.bf16 %v306, %v306
    %v315 = vpack.c.bf16 %v307, %v307
    %v316 = vpack.c.bf16 %v308, %v308
    %v317 = vpack.c.bf16 %v309, %v309
    %v318 = vpack.c.bf16 %v310, %v310
    %v319 = vpack.c.bf16 %v311, %v311
    %v320 = vpack.c.bf16 %v312, %v312
    %v321 = vld [vmem:[#allocation8] sm:$0xf]
    %v322 = vld [vmem:[#allocation8 + $0x4] sm:$0xf]
    %v323 = vld [vmem:[#allocation8 + $0x8] sm:$0xf]
    %v324 = vld [vmem:[#allocation8 + $0xc] sm:$0xf]
    %v325 = vld [vmem:[#allocation8 + $0x10] sm:$0xf]
    %v326 = vld [vmem:[#allocation8 + $0x14] sm:$0xf]
    %v327 = vld [vmem:[#allocation8 + $0x18] sm:$0xf]
    %v328 = vld [vmem:[#allocation8 + $0x1c] sm:$0xf]
    %v329 = vld [vmem:[#allocation8 + $0x20] sm:$0xf]
    %v330 = vld [vmem:[#allocation8 + $0x24] sm:$0xf]
    %v331 = vld [vmem:[#allocation8 + $0x28] sm:$0xf]
    %v332 = vld [vmem:[#allocation8 + $0x2c] sm:$0xf]
    %v333 = vld [vmem:[#allocation8 + $0x30] sm:$0xf]
    %v334 = vld [vmem:[#allocation8 + $0x34] sm:$0xf]
    %v335 = vld [vmem:[#allocation8 + $0x38] sm:$0xf]
    %v336 = vld [vmem:[#allocation8 + $0x3c] sm:$0xf]
    %v337 = vld [vmem:[#allocation8 + $0x40] sm:$0xf]
    %v338 = vld [vmem:[#allocation8 + $0x44] sm:$0xf]
    %v339 = vld [vmem:[#allocation8 + $0x48] sm:$0xf]
    %v340 = vld [vmem:[#allocation8 + $0x4c] sm:$0xf]
    %v341 = vld [vmem:[#allocation8 + $0x50] sm:$0xf]
    %v342 = vld [vmem:[#allocation8 + $0x54] sm:$0xf]
    %v343 = vld [vmem:[#allocation8 + $0x58] sm:$0xf]
    %v344 = vld [vmem:[#allocation8 + $0x5c] sm:$0xf]
    %v345 = vld [vmem:[#allocation8 + $0x60] sm:$0xf]
    %v346 = vld [vmem:[#allocation8 + $0x64] sm:$0xf]
    %v347 = vld [vmem:[#allocation8 + $0x68] sm:$0xf]
    %v348 = vld [vmem:[#allocation8 + $0x6c] sm:$0xf]
    %v349 = vld [vmem:[#allocation8 + $0x70] sm:$0xf]
    %v350 = vld [vmem:[#allocation8 + $0x74] sm:$0xf]
    %v351 = vld [vmem:[#allocation8 + $0x78] sm:$0xf]
    %v352 = vld [vmem:[#allocation8 + $0x7c] sm:$0xf]
    %v353 = vld [vmem:[#allocation8 + $0x80] sm:$0xf]
    %v354 = vld [vmem:[#allocation8 + $0x84] sm:$0xf]
    %v355 = vld [vmem:[#allocation8 + $0x88] sm:$0xf]
    %v356 = vld [vmem:[#allocation8 + $0x8c] sm:$0xf]
    %v357 = vld [vmem:[#allocation8 + $0x90] sm:$0xf]
    %v358 = vld [vmem:[#allocation8 + $0x94] sm:$0xf]
    %v359 = vld [vmem:[#allocation8 + $0x98] sm:$0xf]
    %v360 = vld [vmem:[#allocation8 + $0x9c] sm:$0xf]
    %v361 = vld [vmem:[#allocation8 + $0xa0] sm:$0xf]
    %v362 = vld [vmem:[#allocation8 + $0xa4] sm:$0xf]
    %v363 = vld [vmem:[#allocation8 + $0xa8] sm:$0xf]
    %v364 = vld [vmem:[#allocation8 + $0xac] sm:$0xf]
    %v365 = vld [vmem:[#allocation8 + $0xb0] sm:$0xf]
    %v366 = vld [vmem:[#allocation8 + $0xb4] sm:$0xf]
    %v367 = vld [vmem:[#allocation8 + $0xb8] sm:$0xf]
    %v368 = vld [vmem:[#allocation8 + $0xbc] sm:$0xf]
    %v369 = vld [vmem:[#allocation8 + $0xc0] sm:$0xf]
    %v370 = vld [vmem:[#allocation8 + $0xc4] sm:$0xf]
    %v371 = vld [vmem:[#allocation8 + $0xc8] sm:$0xf]
    %v372 = vld [vmem:[#allocation8 + $0xcc] sm:$0xf]
    %v373 = vld [vmem:[#allocation8 + $0xd0] sm:$0xf]
    %v374 = vld [vmem:[#allocation8 + $0xd4] sm:$0xf]
    %v375 = vld [vmem:[#allocation8 + $0xd8] sm:$0xf]
    %v376 = vld [vmem:[#allocation8 + $0xdc] sm:$0xf]
    %v377 = vld [vmem:[#allocation8 + $0xe0] sm:$0xf]
    %v378 = vld [vmem:[#allocation8 + $0xe4] sm:$0xf]
    %v379 = vld [vmem:[#allocation8 + $0xe8] sm:$0xf]
    %v380 = vld [vmem:[#allocation8 + $0xec] sm:$0xf]
    %v381 = vld [vmem:[#allocation8 + $0xf0] sm:$0xf]
    %v382 = vld [vmem:[#allocation8 + $0xf4] sm:$0xf]
    %v383 = vld [vmem:[#allocation8 + $0xf8] sm:$0xf]
    %v384 = vld [vmem:[#allocation8 + $0xfc] sm:$0xf]
    %v385 = vld [vmem:[#allocation8 + $0x100] sm:$0xf]
    %v386 = vld [vmem:[#allocation8 + $0x104] sm:$0xf]
    %v387 = vld [vmem:[#allocation8 + $0x108] sm:$0xf]
    %v388 = vld [vmem:[#allocation8 + $0x10c] sm:$0xf]
    %v389 = vld [vmem:[#allocation8 + $0x110] sm:$0xf]
    %v390 = vld [vmem:[#allocation8 + $0x114] sm:$0xf]
    %v391 = vld [vmem:[#allocation8 + $0x118] sm:$0xf]
    %v392 = vld [vmem:[#allocation8 + $0x11c] sm:$0xf]
    %v393 = vld [vmem:[#allocation8 + $0x120] sm:$0xf]
    %v394 = vld [vmem:[#allocation8 + $0x124] sm:$0xf]
    %v395 = vld [vmem:[#allocation8 + $0x128] sm:$0xf]
    %v396 = vld [vmem:[#allocation8 + $0x12c] sm:$0xf]
    %v397 = vld [vmem:[#allocation8 + $0x130] sm:$0xf]
    %v398 = vld [vmem:[#allocation8 + $0x134] sm:$0xf]
    %v399 = vld [vmem:[#allocation8 + $0x138] sm:$0xf]
    %v400 = vld [vmem:[#allocation8 + $0x13c] sm:$0xf]
    %v401 = vld [vmem:[#allocation8 + $0x140] sm:$0xf]
    %v402 = vld [vmem:[#allocation8 + $0x144] sm:$0xf]
    %v403 = vld [vmem:[#allocation8 + $0x148] sm:$0xf]
    %v404 = vld [vmem:[#allocation8 + $0x14c] sm:$0xf]
    %v405 = vld [vmem:[#allocation8 + $0x150] sm:$0xf]
    %v406 = vld [vmem:[#allocation8 + $0x154] sm:$0xf]
    %v407 = vld [vmem:[#allocation8 + $0x158] sm:$0xf]
    %v408 = vld [vmem:[#allocation8 + $0x15c] sm:$0xf]
    %v409 = vld [vmem:[#allocation8 + $0x160] sm:$0xf]
    %v410 = vld [vmem:[#allocation8 + $0x164] sm:$0xf]
    %v411 = vld [vmem:[#allocation8 + $0x168] sm:$0xf]
    %v412 = vld [vmem:[#allocation8 + $0x16c] sm:$0xf]
    %v413 = vld [vmem:[#allocation8 + $0x170] sm:$0xf]
    %v414 = vld [vmem:[#allocation8 + $0x174] sm:$0xf]
    %v415 = vld [vmem:[#allocation8 + $0x178] sm:$0xf]
    %v416 = vld [vmem:[#allocation8 + $0x17c] sm:$0xf]
    %v417 = vld [vmem:[#allocation8 + $0x180] sm:$0xf]
    %v418 = vld [vmem:[#allocation8 + $0x184] sm:$0xf]
    %v419 = vld [vmem:[#allocation8 + $0x188] sm:$0xf]
    %v420 = vld [vmem:[#allocation8 + $0x18c] sm:$0xf]
    %v421 = vld [vmem:[#allocation8 + $0x190] sm:$0xf]
    %v422 = vld [vmem:[#allocation8 + $0x194] sm:$0xf]
    %v423 = vld [vmem:[#allocation8 + $0x198] sm:$0xf]
    %v424 = vld [vmem:[#allocation8 + $0x19c] sm:$0xf]
    %v425 = vld [vmem:[#allocation8 + $0x1a0] sm:$0xf]
    %v426 = vld [vmem:[#allocation8 + $0x1a4] sm:$0xf]
    %v427 = vld [vmem:[#allocation8 + $0x1a8] sm:$0xf]
    %v428 = vld [vmem:[#allocation8 + $0x1ac] sm:$0xf]
    %v429 = vld [vmem:[#allocation8 + $0x1b0] sm:$0xf]
    %v430 = vld [vmem:[#allocation8 + $0x1b4] sm:$0xf]
    %v431 = vld [vmem:[#allocation8 + $0x1b8] sm:$0xf]
    %v432 = vld [vmem:[#allocation8 + $0x1bc] sm:$0xf]
    %v433 = vld [vmem:[#allocation8 + $0x1c0] sm:$0xf]
    %v434 = vld [vmem:[#allocation8 + $0x1c4] sm:$0xf]
    %v435 = vld [vmem:[#allocation8 + $0x1c8] sm:$0xf]
    %v436 = vld [vmem:[#allocation8 + $0x1cc] sm:$0xf]
    %v437 = vld [vmem:[#allocation8 + $0x1d0] sm:$0xf]
    %v438 = vld [vmem:[#allocation8 + $0x1d4] sm:$0xf]
    %v439 = vld [vmem:[#allocation8 + $0x1d8] sm:$0xf]
    %v440 = vld [vmem:[#allocation8 + $0x1dc] sm:$0xf]
    %v441 = vld [vmem:[#allocation8 + $0x1e0] sm:$0xf]
    %v442 = vld [vmem:[#allocation8 + $0x1e4] sm:$0xf]
    %v443 = vld [vmem:[#allocation8 + $0x1e8] sm:$0xf]
    %v444 = vld [vmem:[#allocation8 + $0x1ec] sm:$0xf]
    %v445 = vld [vmem:[#allocation8 + $0x1f0] sm:$0xf]
    %v446 = vld [vmem:[#allocation8 + $0x1f4] sm:$0xf]
    %v447 = vld [vmem:[#allocation8 + $0x1f8] sm:$0xf]
    %v448 = vld [vmem:[#allocation8 + $0x1fc] sm:$0xf]
    %v449 = vld [vmem:[%s3] sm:$0x1]
    %v451 = vlaneseq
    %v452 = vshrl.u32 %v451, 7
    %v453 = vsub.s32 0, %v452
    %v454 = vrot.slane %v449, %v453
    %v584 = vunpack.c.l.b16 %v321
    %v585 = vunpack.c.l.b16 %v322
    %v586 = vunpack.c.l.b16 %v323
    %v587 = vunpack.c.l.b16 %v324
    %v588 = vunpack.c.l.b16 %v325
    %v589 = vunpack.c.l.b16 %v326
    %v590 = vunpack.c.l.b16 %v327
    %v591 = vunpack.c.l.b16 %v328
    %v592 = vunpack.c.l.b16 %v329
    %v593 = vunpack.c.l.b16 %v330
    %v594 = vunpack.c.l.b16 %v331
    %v595 = vunpack.c.l.b16 %v332
    %v596 = vunpack.c.l.b16 %v333
    %v597 = vunpack.c.l.b16 %v334
    %v598 = vunpack.c.l.b16 %v335
    %v599 = vunpack.c.l.b16 %v336
    %v600 = vunpack.c.l.b16 %v337
    %v601 = vunpack.c.l.b16 %v338
    %v602 = vunpack.c.l.b16 %v339
    %v603 = vunpack.c.l.b16 %v340
    %v604 = vunpack.c.l.b16 %v341
    %v605 = vunpack.c.l.b16 %v342
    %v606 = vunpack.c.l.b16 %v343
    %v607 = vunpack.c.l.b16 %v344
    %v608 = vunpack.c.l.b16 %v345
    %v609 = vunpack.c.l.b16 %v346
    %v610 = vunpack.c.l.b16 %v347
    %v611 = vunpack.c.l.b16 %v348
    %v612 = vunpack.c.l.b16 %v349
    %v613 = vunpack.c.l.b16 %v350
    %v614 = vunpack.c.l.b16 %v351
    %v615 = vunpack.c.l.b16 %v352
    %v616 = vunpack.c.l.b16 %v353
    %v617 = vunpack.c.l.b16 %v354
    %v618 = vunpack.c.l.b16 %v355
    %v619 = vunpack.c.l.b16 %v356
    %v620 = vunpack.c.l.b16 %v357
    %v621 = vunpack.c.l.b16 %v358
    %v622 = vunpack.c.l.b16 %v359
    %v623 = vunpack.c.l.b16 %v360
    %v624 = vunpack.c.l.b16 %v361
    %v625 = vunpack.c.l.b16 %v362
    %v626 = vunpack.c.l.b16 %v363
    %v627 = vunpack.c.l.b16 %v364
    %v628 = vunpack.c.l.b16 %v365
    %v629 = vunpack.c.l.b16 %v366
    %v630 = vunpack.c.l.b16 %v367
    %v631 = vunpack.c.l.b16 %v368
    %v632 = vunpack.c.l.b16 %v369
    %v633 = vunpack.c.l.b16 %v370
    %v634 = vunpack.c.l.b16 %v371
    %v635 = vunpack.c.l.b16 %v372
    %v636 = vunpack.c.l.b16 %v373
    %v637 = vunpack.c.l.b16 %v374
    %v638 = vunpack.c.l.b16 %v375
    %v639 = vunpack.c.l.b16 %v376
    %v640 = vunpack.c.l.b16 %v377
    %v641 = vunpack.c.l.b16 %v378
    %v642 = vunpack.c.l.b16 %v379
    %v643 = vunpack.c.l.b16 %v380
    %v644 = vunpack.c.l.b16 %v381
    %v645 = vunpack.c.l.b16 %v382
    %v646 = vunpack.c.l.b16 %v383
    %v647 = vunpack.c.l.b16 %v384
    %v648 = vunpack.c.l.b16 %v385
    %v649 = vunpack.c.l.b16 %v386
    %v650 = vunpack.c.l.b16 %v387
    %v651 = vunpack.c.l.b16 %v388
    %v652 = vunpack.c.l.b16 %v389
    %v653 = vunpack.c.l.b16 %v390
    %v654 = vunpack.c.l.b16 %v391
    %v655 = vunpack.c.l.b16 %v392
    %v656 = vunpack.c.l.b16 %v393
    %v657 = vunpack.c.l.b16 %v394
    %v658 = vunpack.c.l.b16 %v395
    %v659 = vunpack.c.l.b16 %v396
    %v660 = vunpack.c.l.b16 %v397
    %v661 = vunpack.c.l.b16 %v398
    %v662 = vunpack.c.l.b16 %v399
    %v663 = vunpack.c.l.b16 %v400
    %v664 = vunpack.c.l.b16 %v401
    %v665 = vunpack.c.l.b16 %v402
    %v666 = vunpack.c.l.b16 %v403
    %v667 = vunpack.c.l.b16 %v404
    %v668 = vunpack.c.l.b16 %v405
    %v669 = vunpack.c.l.b16 %v406
    %v670 = vunpack.c.l.b16 %v407
    %v671 = vunpack.c.l.b16 %v408
    %v672 = vunpack.c.l.b16 %v409
    %v673 = vunpack.c.l.b16 %v410
    %v674 = vunpack.c.l.b16 %v411
    %v675 = vunpack.c.l.b16 %v412
    %v676 = vunpack.c.l.b16 %v413
    %v677 = vunpack.c.l.b16 %v414
    %v678 = vunpack.c.l.b16 %v415
    %v679 = vunpack.c.l.b16 %v416
    %v680 = vunpack.c.l.b16 %v417
    %v681 = vunpack.c.l.b16 %v418
    %v682 = vunpack.c.l.b16 %v419
    %v683 = vunpack.c.l.b16 %v420
    %v684 = vunpack.c.l.b16 %v421
    %v685 = vunpack.c.l.b16 %v422
    %v686 = vunpack.c.l.b16 %v423
    %v687 = vunpack.c.l.b16 %v424
    %v688 = vunpack.c.l.b16 %v425
    %v689 = vunpack.c.l.b16 %v426
    %v690 = vunpack.c.l.b16 %v427
    %v691 = vunpack.c.l.b16 %v428
    %v692 = vunpack.c.l.b16 %v429
    %v693 = vunpack.c.l.b16 %v430
    %v694 = vunpack.c.l.b16 %v431
    %v695 = vunpack.c.l.b16 %v432
    %v696 = vunpack.c.l.b16 %v433
    %v697 = vunpack.c.l.b16 %v434
    %v698 = vunpack.c.l.b16 %v435
    %v699 = vunpack.c.l.b16 %v436
    %v700 = vunpack.c.l.b16 %v437
    %v701 = vunpack.c.l.b16 %v438
    %v702 = vunpack.c.l.b16 %v439
    %v703 = vunpack.c.l.b16 %v440
    %v704 = vunpack.c.l.b16 %v441
    %v705 = vunpack.c.l.b16 %v442
    %v706 = vunpack.c.l.b16 %v443
    %v707 = vunpack.c.l.b16 %v444
    %v708 = vunpack.c.l.b16 %v445
    %v709 = vunpack.c.l.b16 %v446
    %v710 = vunpack.c.l.b16 %v447
    %v711 = vunpack.c.l.b16 %v448
    %v712 = vpack.c.b16 %v585, %v584
    %v713 = vpack.c.b16 %v587, %v586
    %v714 = vpack.c.b16 %v589, %v588
    %v715 = vpack.c.b16 %v591, %v590
    %v716 = vpack.c.b16 %v593, %v592
    %v717 = vpack.c.b16 %v595, %v594
    %v718 = vpack.c.b16 %v597, %v596
    %v719 = vpack.c.b16 %v599, %v598
    %v720 = vpack.c.b16 %v601, %v600
    %v721 = vpack.c.b16 %v603, %v602
    %v722 = vpack.c.b16 %v605, %v604
    %v723 = vpack.c.b16 %v607, %v606
    %v724 = vpack.c.b16 %v609, %v608
    %v725 = vpack.c.b16 %v611, %v610
    %v726 = vpack.c.b16 %v613, %v612
    %v727 = vpack.c.b16 %v615, %v614
    %v728 = vpack.c.b16 %v617, %v616
    %v729 = vpack.c.b16 %v619, %v618
    %v730 = vpack.c.b16 %v621, %v620
    %v731 = vpack.c.b16 %v623, %v622
    %v732 = vpack.c.b16 %v625, %v624
    %v733 = vpack.c.b16 %v627, %v626
    %v734 = vpack.c.b16 %v629, %v628
    %v735 = vpack.c.b16 %v631, %v630
    %v736 = vpack.c.b16 %v633, %v632
    %v737 = vpack.c.b16 %v635, %v634
    %v738 = vpack.c.b16 %v637, %v636
    %v739 = vpack.c.b16 %v639, %v638
    %v740 = vpack.c.b16 %v641, %v640
    %v741 = vpack.c.b16 %v643, %v642
    %v742 = vpack.c.b16 %v645, %v644
    %v743 = vpack.c.b16 %v647, %v646
    %v744 = vpack.c.b16 %v649, %v648
    %v745 = vpack.c.b16 %v651, %v650
    %v746 = vpack.c.b16 %v653, %v652
    %v747 = vpack.c.b16 %v655, %v654
    %v748 = vpack.c.b16 %v657, %v656
    %v749 = vpack.c.b16 %v659, %v658
    %v750 = vpack.c.b16 %v661, %v660
    %v751 = vpack.c.b16 %v663, %v662
    %v752 = vpack.c.b16 %v665, %v664
    %v753 = vpack.c.b16 %v667, %v666
    %v754 = vpack.c.b16 %v669, %v668
    %v755 = vpack.c.b16 %v671, %v670
    %v756 = vpack.c.b16 %v673, %v672
    %v757 = vpack.c.b16 %v675, %v674
    %v758 = vpack.c.b16 %v677, %v676
    %v759 = vpack.c.b16 %v679, %v678
    %v760 = vpack.c.b16 %v681, %v680
    %v761 = vpack.c.b16 %v683, %v682
    %v762 = vpack.c.b16 %v685, %v684
    %v763 = vpack.c.b16 %v687, %v686
    %v764 = vpack.c.b16 %v689, %v688
    %v765 = vpack.c.b16 %v691, %v690
    %v766 = vpack.c.b16 %v693, %v692
    %v767 = vpack.c.b16 %v695, %v694
    %v768 = vpack.c.b16 %v697, %v696
    %v769 = vpack.c.b16 %v699, %v698
    %v770 = vpack.c.b16 %v701, %v700
    %v771 = vpack.c.b16 %v703, %v702
    %v772 = vpack.c.b16 %v705, %v704
    %v773 = vpack.c.b16 %v707, %v706
    %v774 = vpack.c.b16 %v709, %v708
    %v775 = vpack.c.b16 %v711, %v710
    %840 = vmatprep.subr.bf16.mxu0 0
    %841 = vmatpush1.bf16.msra.mxu0 %v712
    %842 = vmatprep.subr.bf16.mxu0 0
    %843 = vmatpush1.bf16.msra.mxu0 %v713
    %844 = vmatprep.subr.bf16.mxu0 0
    %845 = vmatpush1.bf16.msra.mxu0 %v714
    %846 = vmatprep.subr.bf16.mxu0 0
    %847 = vmatpush1.bf16.msra.mxu0 %v715
    %848 = vmatprep.subr.bf16.mxu0 0
    %849 = vmatpush1.bf16.msra.mxu0 %v716
    %850 = vmatprep.subr.bf16.mxu0 0
    %851 = vmatpush1.bf16.msra.mxu0 %v717
    %852 = vmatprep.subr.bf16.mxu0 0
    %853 = vmatpush1.bf16.msra.mxu0 %v718
    %854 = vmatprep.subr.bf16.mxu0 0
    %855 = vmatpush1.bf16.msra.mxu0 %v719
    %856 = vmatprep.subr.bf16.mxu0 0
    %857 = vmatpush1.bf16.msra.mxu0 %v720
    %858 = vmatprep.subr.bf16.mxu0 0
    %859 = vmatpush1.bf16.msra.mxu0 %v721
    %860 = vmatprep.subr.bf16.mxu0 0
    %861 = vmatpush1.bf16.msra.mxu0 %v722
    %862 = vmatprep.subr.bf16.mxu0 0
    %863 = vmatpush1.bf16.msra.mxu0 %v723
    %864 = vmatprep.subr.bf16.mxu0 0
    %865 = vmatpush1.bf16.msra.mxu0 %v724
    %866 = vmatprep.subr.bf16.mxu0 0
    %867 = vmatpush1.bf16.msra.mxu0 %v725
    %868 = vmatprep.subr.bf16.mxu0 0
    %869 = vmatpush1.bf16.msra.mxu0 %v726
    %870 = vmatprep.subr.bf16.mxu0 0
    %871 = vmatpush1.bf16.msra.mxu0 %v727
    %872 = vmatprep.mubr.bf16.mxu0 %v314
    %873 = vmatmul.mubr.bf16.gmra.mrb[0].mxu0 %v313
    %v874 = vpop.f32.mrb[0].mxu0
    %v875 = vadd.f32 %v454, %v874
    %v876 = vpop.f32.mrb[0].mxu0
    %v877 = vpop.f32.mrb[0].mxu0
    %v878 = vpop.f32.mrb[0].mxu0
    %879 = vdwg.mxu0
    %880 = vmatprep.subr.bf16.mxu0 0
    %881 = vmatpush1.bf16.msra.mxu0 %v728
    %882 = vmatprep.subr.bf16.mxu0 0
    %883 = vmatpush1.bf16.msra.mxu0 %v729
    %884 = vmatprep.subr.bf16.mxu0 0
    %885 = vmatpush1.bf16.msra.mxu0 %v730
    %886 = vmatprep.subr.bf16.mxu0 0
    %887 = vmatpush1.bf16.msra.mxu0 %v731
    %888 = vmatprep.subr.bf16.mxu0 0
    %889 = vmatpush1.bf16.msra.mxu0 %v732
    %890 = vmatprep.subr.bf16.mxu0 0
    %891 = vmatpush1.bf16.msra.mxu0 %v733
    %892 = vmatprep.subr.bf16.mxu0 0
    %893 = vmatpush1.bf16.msra.mxu0 %v734
    %894 = vmatprep.subr.bf16.mxu0 0
    %895 = vmatpush1.bf16.msra.mxu0 %v735
    %896 = vmatprep.subr.bf16.mxu0 0
    %897 = vmatpush1.bf16.msra.mxu0 %v736
    %898 = vmatprep.subr.bf16.mxu0 0
    %899 = vmatpush1.bf16.msra.mxu0 %v737
    %900 = vmatprep.subr.bf16.mxu0 0
    %901 = vmatpush1.bf16.msra.mxu0 %v738
    %902 = vmatprep.subr.bf16.mxu0 0
    %903 = vmatpush1.bf16.msra.mxu0 %v739
    %904 = vmatprep.subr.bf16.mxu0 0
    %905 = vmatpush1.bf16.msra.mxu0 %v740
    %906 = vmatprep.subr.bf16.mxu0 0
    %907 = vmatpush1.bf16.msra.mxu0 %v741
    %908 = vmatprep.subr.bf16.mxu0 0
    %909 = vmatpush1.bf16.msra.mxu0 %v742
    %910 = vmatprep.subr.bf16.mxu0 0
    %911 = vmatpush1.bf16.msra.mxu0 %v743
    %912 = vmatprep.mubr.bf16.mxu0 %v316
    %913 = vmatmul.mubr.bf16.gmra.mrb[0].mxu0 %v315
    %v914 = vpop.f32.mrb[0].mxu0
    %v915 = vadd.f32 %v875, %v914
    %v916 = vpop.f32.mrb[0].mxu0
    %v917 = vpop.f32.mrb[0].mxu0
    %v918 = vpop.f32.mrb[0].mxu0
    %919 = vdwg.mxu0
    %920 = vmatprep.subr.bf16.mxu0 0
    %921 = vmatpush1.bf16.msra.mxu0 %v744
    %922 = vmatprep.subr.bf16.mxu0 0
    %923 = vmatpush1.bf16.msra.mxu0 %v745
    %924 = vmatprep.subr.bf16.mxu0 0
    %925 = vmatpush1.bf16.msra.mxu0 %v746
    %926 = vmatprep.subr.bf16.mxu0 0
    %927 = vmatpush1.bf16.msra.mxu0 %v747
    %928 = vmatprep.subr.bf16.mxu0 0
    %929 = vmatpush1.bf16.msra.mxu0 %v748
    %930 = vmatprep.subr.bf16.mxu0 0
    %931 = vmatpush1.bf16.msra.mxu0 %v749
    %932 = vmatprep.subr.bf16.mxu0 0
    %933 = vmatpush1.bf16.msra.mxu0 %v750
    %934 = vmatprep.subr.bf16.mxu0 0
    %935 = vmatpush1.bf16.msra.mxu0 %v751
    %936 = vmatprep.subr.bf16.mxu0 0
    %937 = vmatpush1.bf16.msra.mxu0 %v752
    %938 = vmatprep.subr.bf16.mxu0 0
    %939 = vmatpush1.bf16.msra.mxu0 %v753
    %940 = vmatprep.subr.bf16.mxu0 0
    %941 = vmatpush1.bf16.msra.mxu0 %v754
    %942 = vmatprep.subr.bf16.mxu0 0
    %943 = vmatpush1.bf16.msra.mxu0 %v755
    %944 = vmatprep.subr.bf16.mxu0 0
    %945 = vmatpush1.bf16.msra.mxu0 %v756
    %946 = vmatprep.subr.bf16.mxu0 0
    %947 = vmatpush1.bf16.msra.mxu0 %v757
    %948 = vmatprep.subr.bf16.mxu0 0
    %949 = vmatpush1.bf16.msra.mxu0 %v758
    %950 = vmatprep.subr.bf16.mxu0 0
    %951 = vmatpush1.bf16.msra.mxu0 %v759
    %952 = vmatprep.mubr.bf16.mxu0 %v318
    %953 = vmatmul.mubr.bf16.gmra.mrb[0].mxu0 %v317
    %v954 = vpop.f32.mrb[0].mxu0
    %v955 = vadd.f32 %v915, %v954
    %v956 = vpop.f32.mrb[0].mxu0
    %v957 = vpop.f32.mrb[0].mxu0
    %v958 = vpop.f32.mrb[0].mxu0
    %959 = vdwg.mxu0
    %960 = vmatprep.subr.bf16.mxu0 0
    %961 = vmatpush1.bf16.msra.mxu0 %v760
    %962 = vmatprep.subr.bf16.mxu0 0
    %963 = vmatpush1.bf16.msra.mxu0 %v761
    %964 = vmatprep.subr.bf16.mxu0 0
    %965 = vmatpush1.bf16.msra.mxu0 %v762
    %966 = vmatprep.subr.bf16.mxu0 0
    %967 = vmatpush1.bf16.msra.mxu0 %v763
    %968 = vmatprep.subr.bf16.mxu0 0
    %969 = vmatpush1.bf16.msra.mxu0 %v764
    %970 = vmatprep.subr.bf16.mxu0 0
    %971 = vmatpush1.bf16.msra.mxu0 %v765
    %972 = vmatprep.subr.bf16.mxu0 0
    %973 = vmatpush1.bf16.msra.mxu0 %v766
    %974 = vmatprep.subr.bf16.mxu0 0
    %975 = vmatpush1.bf16.msra.mxu0 %v767
    %976 = vmatprep.subr.bf16.mxu0 0
    %977 = vmatpush1.bf16.msra.mxu0 %v768
    %978 = vmatprep.subr.bf16.mxu0 0
    %979 = vmatpush1.bf16.msra.mxu0 %v769
    %980 = vmatprep.subr.bf16.mxu0 0
    %981 = vmatpush1.bf16.msra.mxu0 %v770
    %982 = vmatprep.subr.bf16.mxu0 0
    %983 = vmatpush1.bf16.msra.mxu0 %v771
    %984 = vmatprep.subr.bf16.mxu0 0
    %985 = vmatpush1.bf16.msra.mxu0 %v772
    %986 = vmatprep.subr.bf16.mxu0 0
    %987 = vmatpush1.bf16.msra.mxu0 %v773
    %988 = vmatprep.subr.bf16.mxu0 0
    %989 = vmatpush1.bf16.msra.mxu0 %v774
    %990 = vmatprep.subr.bf16.mxu0 0
    %991 = vmatpush1.bf16.msra.mxu0 %v775
    %992 = vmatprep.mubr.bf16.mxu0 %v320
    %993 = vmatmul.mubr.bf16.gmra.mrb[0].mxu0 %v319
    %v994 = vpop.f32.mrb[0].mxu0
    %v995 = vadd.f32 %v955, %v994
    %v996 = vpop.f32.mrb[0].mxu0
    %v997 = vpop.f32.mrb[0].mxu0
    %v998 = vpop.f32.mrb[0].mxu0
    %999 = vdwg.mxu0
    %v1000 = vmax.f32 %v995, 0.0
    %1001 = vst [vmem:[#allocation10] sm:$0xff] %v1000
    // Predicated region
    $region22: #{tpu_custom_call.1} parent=1 // pred_check
      _
    $region23: #{tpu_custom_call.1} parent=1 // pred_check_branch
      %1003 = sbr.rel (0) target = $region25
    $region24: #{tpu_custom_call.1} parent=1 // pred_region
      %s1005 = ssub.s32 128, 128
      %1006 = vsyncadd [#allocation7], %s1005
      %s1008 = sshll.u32 [#allocation10], 4
      %s1009 = int_to_ptr.vmem [resolvable:$true] %s1008
      %1011 = dma.vmem_to_hbm [thread:$0]  %s1009, 128, %s4, [#allocation7]
    $region25: #{tpu_custom_call.1} parent=1 // pred_fallthru
      _
    // Predicated region
    $region26: #{tpu_custom_call.1} parent=1 // pred_check
      _
    $region27: #{tpu_custom_call.1} parent=1 // pred_check_branch
      %1013 = sbr.rel (0) target = $region29
    $region28: #{tpu_custom_call.1} parent=1 // pred_region
      %1014 = dma.done [#allocation7], 128
    $region29: #{tpu_custom_call.1} parent=1 // pred_fallthru
      _
    %1015 = vsyncpa [#allocation6], 1
    %1016 = vsyncpa [#allocation9], 1
    %1017 = vsyncpa [#allocation7], 1

</llo_original>
